<compile_context>
chip_gen: v6e
topology: v6e:2x2x1
jax: 0.10.0
libtpu: 0.0.40
codegen_flags: <defaults>
</compile_context>

<pallas_src>
import numpy as np
import jax
import jax.numpy as jnp
from jax.experimental import pallas as pl
from jax.experimental.pallas import tpu as pltpu

NEG_SLOPE = 0.1   # LeakyReLU(0.1)


def _round_up(v, m):
    return -(-v // m) * m


def _pyramid_geometry(N, in_channels, H, W, w_shapes, strides, paddings):
    """All static geometry for the fused, scatter-chained pyramid."""
    stages = []
    sigma = 1                       # scatter factor of the current stage input
    h_in, w_in, cin = H, W, in_channels
    for (cout, cin_w, kh, kw), s, p in zip(w_shapes, strides, paddings):
        assert cin_w == cin and kh == kw, "square kernels / matching channels"
        k = kh
        ho = (h_in + 2 * p - k) // s + 1
        wo = (w_in + 2 * p - k) // s + 1
        stages.append(dict(cin=cin, cout=cout, k=k, s=s, p=p,
                           h_in=h_in, w_in=w_in, ho=ho, wo=wo,
                           sigma_in=sigma, sigma_out=sigma * s,
                           c8=_round_up(cin, 8)))
        sigma *= s
        h_in, w_in, cin = ho, wo, cout

    # Common slab geometry: large enough for every stage's (scattered) padded
    # input.  All stages share it so inter-stage handoff is a plain copy.
    hslab = max(st['sigma_in'] * (st['h_in'] + 2 * st['p'] - 1) + 1 for st in stages)
    wslab = max(st['sigma_in'] * (st['w_in'] + 2 * st['p'] - 1) + 1 for st in stages)
    P = hslab * wslab
    npc = _round_up(N * P, 128)           # dot / output width (lane dense)
    off_neg = max(st['sigma_in'] * st['p'] * (wslab + 1) for st in stages)
    off_pos = max(st['sigma_in'] * (st['k'] - 1 - st['p']) * (wslab + 1)
                  for st in stages)
    base = _round_up(max(off_neg, 1), 128)        # data start column in a slab
    slabw = _round_up(base + npc + max(off_pos, 0), 128)

    for st in stages:
        offs = []
        for dh in range(st['k']):
            for dw in range(st['k']):
                offs.append(st['sigma_in'] * ((dh - st['p']) * wslab
                                              + (dw - st['p'])))
        st['offs'] = tuple(offs)
        st['rows'] = st['k'] * st['k'] * st['c8']
        # bounding box of valid (scattered) outputs inside the slab
        st['rmax'] = st['sigma_out'] * (st['ho'] - 1) + 1
        st['cmax'] = st['sigma_out'] * (st['wo'] - 1) + 1

    return dict(N=N, hslab=hslab, wslab=wslab, P=P, npc=npc, base=base,
                slabw=slabw, stages=stages)


def _make_fused_kernel(geo):
    stages = geo['stages']
    n = len(stages)
    npc, base = geo['npc'], geo['base']

    def kernel(*refs):
        i = 0
        x_ref = refs[i]; i += 1
        w_refs = refs[i:i + n]; i += n
        b_refs = refs[i:i + n]; i += n
        m_refs = refs[i:i + n - 1]; i += n - 1
        o_refs = refs[i:i + n]; i += n
        slab_refs = refs[i:i + n - 1]; i += n - 1
        tap_ref = refs[i]

        # Inter-stage slabs must be zero outside the stored activation window:
        # that is where the next stage's zero padding is read from.
        for sref in slab_refs:
            sref[...] = jnp.zeros(sref.shape, sref.dtype)

        src = x_ref
        for si, st in enumerate(stages):
            c8 = st['c8']
            # Build the (k*k*c8, npc) tap stack from contiguous slices of the
            # resident slab -> one K=k*k*c8 MXU dot instead of k*k small ones.
            for t, off in enumerate(st['offs']):
                tap_ref[t * c8:(t + 1) * c8, :] = (
                    src[0:c8, base + off: base + off + npc])
            taps = tap_ref[0:st['rows'], :]
            y = jnp.dot(w_refs[si][...], taps,
                        preferred_element_type=jnp.float32)
            y = y + b_refs[si][...]                          # bias
            y = jnp.where(y >= 0.0, y, NEG_SLOPE * y)        # LeakyReLU(0.1)
            o_refs[si][...] = y.astype(o_refs[si].dtype)     # lane-dense store
            if si + 1 < n:
                # Zero the wrap/garbage columns, then park the activation in
                # VMEM as the next stage's (scatter-chained) input slab.
                slab_refs[si][0:st['cout'], base:base + npc] = y * m_refs[si][...]
                src = slab_refs[si]

    return kernel


def pyramid_forward(x, params, strides, paddings):
    """Returns the list of per-stage features, like Pyramid.forward (NCHW)."""
    N, Cin, H, W = x.shape
    w_shapes = [tuple(w.shape) for (w, _) in params]
    geo = _pyramid_geometry(N, Cin, H, W, w_shapes, strides, paddings)
    stages = geo['stages']
    n = len(stages)
    hs, ws, P = geo['hslab'], geo['wslab'], geo['P']
    npc, base, slabw = geo['npc'], geo['base'], geo['slabw']

    # --- stage-1 input -> channel-major slab layout (one tiny XLA prep) -----
    c8_0 = stages[0]['c8']
    xt = jnp.transpose(x, (1, 0, 2, 3)).astype(jnp.float32)      # (Cin,N,H,W)
    xt = jnp.pad(xt, ((0, c8_0 - Cin), (0, 0), (0, hs - H), (0, ws - W)))
    x_slab = jnp.pad(xt.reshape(c8_0, N * P),
                     ((0, 0), (base, slabw - base - N * P)))      # (c8, slabw)

    # --- weights / biases / validity masks ----------------------------------
    w_flat, b_col, masks = [], [], []
    for si, ((w, b), st) in enumerate(zip(params, stages)):
        wp = jnp.pad(w.astype(jnp.float32),
                     ((0, 0), (0, st['c8'] - st['cin']), (0, 0), (0, 0)))
        wp = jnp.transpose(wp, (0, 2, 3, 1)).reshape(st['cout'], st['rows'])
        w_flat.append(wp)
        b_col.append(b.astype(jnp.float32).reshape(st['cout'], 1))
        if si + 1 < n:                       # mask feeding the next stage
            cols = np.arange(npc)
            q = cols % P
            valid = ((cols < N * P)
                     & ((q // ws) < st['rmax'])
                     & ((q % ws) < st['cmax']))
            masks.append(jnp.asarray(valid.astype(np.float32)).reshape(1, npc))

    full2d = lambda shape: pl.BlockSpec(shape, lambda i: (0, 0))
    in_specs = ([full2d((c8_0, slabw))]
                + [full2d(tuple(w.shape)) for w in w_flat]
                + [full2d(tuple(b.shape)) for b in b_col]
                + [full2d(tuple(m.shape)) for m in masks])
    out_specs = tuple(full2d((st['cout'], npc)) for st in stages)
    out_shape = tuple(jax.ShapeDtypeStruct((st['cout'], npc), jnp.float32)
                      for st in stages)
    scratch = ([pltpu.VMEM((stages[si + 1]['c8'], slabw), jnp.float32)
                for si in range(n - 1)]
               + [pltpu.VMEM((max(st['rows'] for st in stages), npc),
                             jnp.float32)])

    outs = pl.pallas_call(
        _make_fused_kernel(geo),
        grid=(1,),
        in_specs=in_specs,
        out_specs=out_specs,
        out_shape=out_shape,
        scratch_shapes=scratch,
        compiler_params=pltpu.CompilerParams(
            dimension_semantics=("arbitrary",)),
    )(x_slab, *w_flat, *b_col, *masks)

    # --- crop the (Cout, npc) slabs back to NCHW features -------------------
    feats = []
    for st, o in zip(stages, outs):
        g = o[:, :N * P].reshape(st['cout'], N, hs, ws)
        so = st['sigma_out']
        g = g[:, :, :so * (st['ho'] - 1) + 1:so, :so * (st['wo'] - 1) + 1:so]
        feats.append(jnp.transpose(g, (1, 0, 2, 3)))
    return feats


def init_pyramid_params(key, in_channels, n_feats, kernel_sizes):
    """Deterministic init matching nn.Conv2d parameter shapes (OIHW + bias)."""
    params = []
    cin = in_channels
    for k in kernel_sizes:
        key, wk, bk = jax.random.split(key, 3)
        fan_in = cin * k * k
        bound = 1.0 / (fan_in ** 0.5)
        w = jax.random.uniform(wk, (n_feats, cin, k, k), jnp.float32, -bound, bound)
        b = jax.random.uniform(bk, (n_feats,), jnp.float32, -bound, bound)
        params.append((w, b))
        cin = n_feats
    return params


def _ref_forward(x, params, strides, paddings):
    """Pure-JAX reference (XLA conv) for a correctness check."""
    feats = []
    for (w, b), s, p in zip(params, strides, paddings):
        y = jax.lax.conv_general_dilated(
            x, w, window_strides=(s, s), padding=((p, p), (p, p)),
            dimension_numbers=("NCHW", "OIHW", "NCHW"))
        y = y + b.reshape(1, -1, 1, 1)
        x = jnp.where(y >= 0.0, y, NEG_SLOPE * y)
        feats.append(x)
    return feats


if __name__ == "__main__":
    key = jax.random.PRNGKey(0)
    kx, kp = jax.random.split(key)

    in_channels, n_feats = 4, 8
    kernel_sizes, strides, paddings = [3, 3, 3], [1, 2, 2], [1, 1, 1]

    x = jax.random.normal(kx, (2, in_channels, 16, 16), jnp.float32)
    params = init_pyramid_params(kp, in_channels, n_feats, kernel_sizes)

    fwd = jax.jit(lambda xx, pp: pyramid_forward(xx, pp, strides, paddings))
    feats = fwd(x, params)
    feats = [jax.block_until_ready(f) for f in feats]

    refs = _ref_forward(x, params, strides, paddings)
    expected_shapes = [(2, n_feats, 16, 16), (2, n_feats, 8, 8), (2, n_feats, 4, 4)]
    for f, r, es in zip(feats, refs, expected_shapes):
        assert f.shape == es, (f.shape, es)
        assert jnp.allclose(f, r, atol=1e-4, rtol=1e-4), "mismatch vs reference conv"

    print("KERNEL_OK")
</pallas_src>

<mosaic_0001>
module attributes {stable_mosaic.version = 11 : i64} {
  func.func @kernel(%arg0: i32, %arg1: memref<8x1024xf32, #tpu.memory_space<vmem>>, %arg2: memref<8x72xf32, #tpu.memory_space<vmem>>, %arg3: memref<8x72xf32, #tpu.memory_space<vmem>>, %arg4: memref<8x72xf32, #tpu.memory_space<vmem>>, %arg5: memref<8x1xf32, #tpu.memory_space<vmem>>, %arg6: memref<8x1xf32, #tpu.memory_space<vmem>>, %arg7: memref<8x1xf32, #tpu.memory_space<vmem>>, %arg8: memref<1x768xf32, #tpu.memory_space<vmem>>, %arg9: memref<1x768xf32, #tpu.memory_space<vmem>>, %arg10: memref<8x768xf32, #tpu.memory_space<vmem>>, %arg11: memref<8x768xf32, #tpu.memory_space<vmem>>, %arg12: memref<8x768xf32, #tpu.memory_space<vmem>>, %arg13: memref<8x1024xf32, #tpu.memory_space<vmem>>, %arg14: memref<8x1024xf32, #tpu.memory_space<vmem>>, %arg15: memref<72x768xf32, #tpu.memory_space<vmem>>) attributes {dimension_semantics = [#tpu.dimension_semantics<arbitrary>], iteration_bounds = array<i64: 1>, scalar_prefetch = 0 : i64, scratch_operands = 3 : i64, tpu.core_type = #tpu.core_type<tc>, window_params = [{pipeline_mode = #tpu.pipeline_mode<synchronous>, transform_indices = @transform_0, window_bounds = array<i64: 8, 1024>}, {pipeline_mode = #tpu.pipeline_mode<synchronous>, transform_indices = @transform_1, window_bounds = array<i64: 8, 72>}, {pipeline_mode = #tpu.pipeline_mode<synchronous>, transform_indices = @transform_2, window_bounds = array<i64: 8, 72>}, {pipeline_mode = #tpu.pipeline_mode<synchronous>, transform_indices = @transform_3, window_bounds = array<i64: 8, 72>}, {pipeline_mode = #tpu.pipeline_mode<synchronous>, transform_indices = @transform_4, window_bounds = array<i64: 8, 1>}, {pipeline_mode = #tpu.pipeline_mode<synchronous>, transform_indices = @transform_5, window_bounds = array<i64: 8, 1>}, {pipeline_mode = #tpu.pipeline_mode<synchronous>, transform_indices = @transform_6, window_bounds = array<i64: 8, 1>}, {pipeline_mode = #tpu.pipeline_mode<synchronous>, transform_indices = @transform_7, window_bounds = array<i64: 1, 768>}, {pipeline_mode = #tpu.pipeline_mode<synchronous>, transform_indices = @transform_8, window_bounds = array<i64: 1, 768>}, {pipeline_mode = #tpu.pipeline_mode<synchronous>, transform_indices = @transform_9, window_bounds = array<i64: 8, 768>}, {pipeline_mode = #tpu.pipeline_mode<synchronous>, transform_indices = @transform_10, window_bounds = array<i64: 8, 768>}, {pipeline_mode = #tpu.pipeline_mode<synchronous>, transform_indices = @transform_11, window_bounds = array<i64: 8, 768>}]} {
    %cst = arith.constant 0.000000e+00 : f32
    %0 = vector.broadcast %cst : f32 to vector<8x1024xf32>
    %c0 = arith.constant 0 : index
    %c0_0 = arith.constant 0 : index
    %1 = vector.load %arg13[%c0, %c0_0] : memref<8x1024xf32, #tpu.memory_space<vmem>>, vector<8x1024xf32>
    tpu.vector_store %arg13[%c0, %c0_0], %0 {strides = array<i32>} : memref<8x1024xf32, #tpu.memory_space<vmem>>, vector<8x1024xf32>,
    %cst_1 = arith.constant 0.000000e+00 : f32
    %2 = vector.broadcast %cst_1 : f32 to vector<8x1024xf32>
    %c0_2 = arith.constant 0 : index
    %c0_3 = arith.constant 0 : index
    %3 = vector.load %arg14[%c0_2, %c0_3] : memref<8x1024xf32, #tpu.memory_space<vmem>>, vector<8x1024xf32>
    tpu.vector_store %arg14[%c0_2, %c0_3], %2 {strides = array<i32>} : memref<8x1024xf32, #tpu.memory_space<vmem>>, vector<8x1024xf32>,
    %c0_4 = arith.constant 0 : index
    %c108 = arith.constant 108 : index
    %4 = vector.load %arg1[%c0_4, %c108] : memref<8x1024xf32, #tpu.memory_space<vmem>>, vector<8x768xf32>
    %c0_5 = arith.constant 0 : index
    %c0_6 = arith.constant 0 : index
    %5 = vector.load %arg15[%c0_5, %c0_6] : memref<72x768xf32, #tpu.memory_space<vmem>>, vector<8x768xf32>
    tpu.vector_store %arg15[%c0_5, %c0_6], %4 {strides = array<i32>} : memref<72x768xf32, #tpu.memory_space<vmem>>, vector<8x768xf32>,
    %c0_7 = arith.constant 0 : index
    %c109 = arith.constant 109 : index
    %6 = vector.load %arg1[%c0_7, %c109] : memref<8x1024xf32, #tpu.memory_space<vmem>>, vector<8x768xf32>
    %c8 = arith.constant 8 : index
    %c0_8 = arith.constant 0 : index
    %7 = vector.load %arg15[%c8, %c0_8] : memref<72x768xf32, #tpu.memory_space<vmem>>, vector<8x768xf32>
    tpu.vector_store %arg15[%c8, %c0_8], %6 {strides = array<i32>} : memref<72x768xf32, #tpu.memory_space<vmem>>, vector<8x768xf32>,
    %c0_9 = arith.constant 0 : index
    %c110 = arith.constant 110 : index
    %8 = vector.load %arg1[%c0_9, %c110] : memref<8x1024xf32, #tpu.memory_space<vmem>>, vector<8x768xf32>
    %c16 = arith.constant 16 : index
    %c0_10 = arith.constant 0 : index
    %9 = vector.load %arg15[%c16, %c0_10] : memref<72x768xf32, #tpu.memory_space<vmem>>, vector<8x768xf32>
    tpu.vector_store %arg15[%c16, %c0_10], %8 {strides = array<i32>} : memref<72x768xf32, #tpu.memory_space<vmem>>, vector<8x768xf32>,
    %c0_11 = arith.constant 0 : index
    %c127 = arith.constant 127 : index
    %10 = vector.load %arg1[%c0_11, %c127] : memref<8x1024xf32, #tpu.memory_space<vmem>>, vector<8x768xf32>
    %c24 = arith.constant 24 : index
    %c0_12 = arith.constant 0 : index
    %11 = vector.load %arg15[%c24, %c0_12] : memref<72x768xf32, #tpu.memory_space<vmem>>, vector<8x768xf32>
    tpu.vector_store %arg15[%c24, %c0_12], %10 {strides = array<i32>} : memref<72x768xf32, #tpu.memory_space<vmem>>, vector<8x768xf32>,
    %c0_13 = arith.constant 0 : index
    %c128 = arith.constant 128 : index
    %12 = vector.load %arg1[%c0_13, %c128] : memref<8x1024xf32, #tpu.memory_space<vmem>>, vector<8x768xf32>
    %c32 = arith.constant 32 : index
    %c0_14 = arith.constant 0 : index
    %13 = vector.load %arg15[%c32, %c0_14] : memref<72x768xf32, #tpu.memory_space<vmem>>, vector<8x768xf32>
    tpu.vector_store %arg15[%c32, %c0_14], %12 {strides = array<i32>} : memref<72x768xf32, #tpu.memory_space<vmem>>, vector<8x768xf32>,
    %c0_15 = arith.constant 0 : index
    %c129 = arith.constant 129 : index
    %14 = vector.load %arg1[%c0_15, %c129] : memref<8x1024xf32, #tpu.memory_space<vmem>>, vector<8x768xf32>
    %c40 = arith.constant 40 : index
    %c0_16 = arith.constant 0 : index
    %15 = vector.load %arg15[%c40, %c0_16] : memref<72x768xf32, #tpu.memory_space<vmem>>, vector<8x768xf32>
    tpu.vector_store %arg15[%c40, %c0_16], %14 {strides = array<i32>} : memref<72x768xf32, #tpu.memory_space<vmem>>, vector<8x768xf32>,
    %c0_17 = arith.constant 0 : index
    %c146 = arith.constant 146 : index
    %16 = vector.load %arg1[%c0_17, %c146] : memref<8x1024xf32, #tpu.memory_space<vmem>>, vector<8x768xf32>
    %c48 = arith.constant 48 : index
    %c0_18 = arith.constant 0 : index
    %17 = vector.load %arg15[%c48, %c0_18] : memref<72x768xf32, #tpu.memory_space<vmem>>, vector<8x768xf32>
    tpu.vector_store %arg15[%c48, %c0_18], %16 {strides = array<i32>} : memref<72x768xf32, #tpu.memory_space<vmem>>, vector<8x768xf32>,
    %c0_19 = arith.constant 0 : index
    %c147 = arith.constant 147 : index
    %18 = vector.load %arg1[%c0_19, %c147] : memref<8x1024xf32, #tpu.memory_space<vmem>>, vector<8x768xf32>
    %c56 = arith.constant 56 : index
    %c0_20 = arith.constant 0 : index
    %19 = vector.load %arg15[%c56, %c0_20] : memref<72x768xf32, #tpu.memory_space<vmem>>, vector<8x768xf32>
    tpu.vector_store %arg15[%c56, %c0_20], %18 {strides = array<i32>} : memref<72x768xf32, #tpu.memory_space<vmem>>, vector<8x768xf32>,
    %c0_21 = arith.constant 0 : index
    %c148 = arith.constant 148 : index
    %20 = vector.load %arg1[%c0_21, %c148] : memref<8x1024xf32, #tpu.memory_space<vmem>>, vector<8x768xf32>
    %c64 = arith.constant 64 : index
    %c0_22 = arith.constant 0 : index
    %21 = vector.load %arg15[%c64, %c0_22] : memref<72x768xf32, #tpu.memory_space<vmem>>, vector<8x768xf32>
    tpu.vector_store %arg15[%c64, %c0_22], %20 {strides = array<i32>} : memref<72x768xf32, #tpu.memory_space<vmem>>, vector<8x768xf32>,
    %c0_23 = arith.constant 0 : index
    %c0_24 = arith.constant 0 : index
    %22 = vector.load %arg15[%c0_23, %c0_24] : memref<72x768xf32, #tpu.memory_space<vmem>>, vector<72x768xf32>
    %c0_25 = arith.constant 0 : index
    %c0_26 = arith.constant 0 : index
    %23 = vector.load %arg2[%c0_25, %c0_26] : memref<8x72xf32, #tpu.memory_space<vmem>>, vector<8x72xf32>
    %cst_27 = arith.constant dense<0.000000e+00> : vector<8x768xf32>
    %24 = tpu.matmul %23, %22, %cst_27 {dimension_numbers = #tpu.dot_dimension_numbers<[1], [0], [0], [1], [0, 0, 1, 1], [], []>} : vector<8x72xf32>, vector<72x768xf32>, vector<8x768xf32> -> vector<8x768xf32>
    %c0_28 = arith.constant 0 : index
    %c0_29 = arith.constant 0 : index
    %25 = vector.load %arg5[%c0_28, %c0_29] : memref<8x1xf32, #tpu.memory_space<vmem>>, vector<8x1xf32>
    %26 = vector.broadcast %25 : vector<8x1xf32> to vector<8x768xf32>
    %27 = arith.addf %24, %26 : vector<8x768xf32>
    %cst_30 = arith.constant 0.000000e+00 : f32
    %28 = vector.broadcast %cst_30 : f32 to vector<8x768xf32>
    %29 = arith.cmpf oge, %27, %28 : vector<8x768xf32>
    %cst_31 = arith.constant 1.000000e-01 : f32
    %30 = vector.broadcast %cst_31 : f32 to vector<8x768xf32>
    %31 = arith.mulf %30, %27 : vector<8x768xf32>
    %32 = arith.select %29, %27, %31 : vector<8x768xi1>, vector<8x768xf32>
    %c0_32 = arith.constant 0 : index
    %c0_33 = arith.constant 0 : index
    %33 = vector.load %arg10[%c0_32, %c0_33] : memref<8x768xf32, #tpu.memory_space<vmem>>, vector<8x768xf32>
    tpu.vector_store %arg10[%c0_32, %c0_33], %32 {strides = array<i32>} : memref<8x768xf32, #tpu.memory_space<vmem>>, vector<8x768xf32>,
    %c0_34 = arith.constant 0 : index
    %c0_35 = arith.constant 0 : index
    %34 = vector.load %arg8[%c0_34, %c0_35] : memref<1x768xf32, #tpu.memory_space<vmem>>, vector<1x768xf32>
    %35 = vector.broadcast %34 : vector<1x768xf32> to vector<8x768xf32>
    %36 = arith.mulf %32, %35 : vector<8x768xf32>
    %c0_36 = arith.constant 0 : index
    %c128_37 = arith.constant 128 : index
    %37 = vector.load %arg13[%c0_36, %c128_37] : memref<8x1024xf32, #tpu.memory_space<vmem>>, vector<8x768xf32>
    tpu.vector_store %arg13[%c0_36, %c128_37], %36 {strides = array<i32>} : memref<8x1024xf32, #tpu.memory_space<vmem>>, vector<8x768xf32>,
    %c0_38 = arith.constant 0 : index
    %c108_39 = arith.constant 108 : index
    %38 = vector.load %arg13[%c0_38, %c108_39] : memref<8x1024xf32, #tpu.memory_space<vmem>>, vector<8x768xf32>
    %c0_40 = arith.constant 0 : index
    %c0_41 = arith.constant 0 : index
    %39 = vector.load %arg15[%c0_40, %c0_41] : memref<72x768xf32, #tpu.memory_space<vmem>>, vector<8x768xf32>
    tpu.vector_store %arg15[%c0_40, %c0_41], %38 {strides = array<i32>} : memref<72x768xf32, #tpu.memory_space<vmem>>, vector<8x768xf32>,
    %c0_42 = arith.constant 0 : index
    %c109_43 = arith.constant 109 : index
    %40 = vector.load %arg13[%c0_42, %c109_43] : memref<8x1024xf32, #tpu.memory_space<vmem>>, vector<8x768xf32>
    %c8_44 = arith.constant 8 : index
    %c0_45 = arith.constant 0 : index
    %41 = vector.load %arg15[%c8_44, %c0_45] : memref<72x768xf32, #tpu.memory_space<vmem>>, vector<8x768xf32>
    tpu.vector_store %arg15[%c8_44, %c0_45], %40 {strides = array<i32>} : memref<72x768xf32, #tpu.memory_space<vmem>>, vector<8x768xf32>,
    %c0_46 = arith.constant 0 : index
    %c110_47 = arith.constant 110 : index
    %42 = vector.load %arg13[%c0_46, %c110_47] : memref<8x1024xf32, #tpu.memory_space<vmem>>, vector<8x768xf32>
    %c16_48 = arith.constant 16 : index
    %c0_49 = arith.constant 0 : index
    %43 = vector.load %arg15[%c16_48, %c0_49] : memref<72x768xf32, #tpu.memory_space<vmem>>, vector<8x768xf32>
    tpu.vector_store %arg15[%c16_48, %c0_49], %42 {strides = array<i32>} : memref<72x768xf32, #tpu.memory_space<vmem>>, vector<8x768xf32>,
    %c0_50 = arith.constant 0 : index
    %c127_51 = arith.constant 127 : index
    %44 = vector.load %arg13[%c0_50, %c127_51] : memref<8x1024xf32, #tpu.memory_space<vmem>>, vector<8x768xf32>
    %c24_52 = arith.constant 24 : index
    %c0_53 = arith.constant 0 : index
    %45 = vector.load %arg15[%c24_52, %c0_53] : memref<72x768xf32, #tpu.memory_space<vmem>>, vector<8x768xf32>
    tpu.vector_store %arg15[%c24_52, %c0_53], %44 {strides = array<i32>} : memref<72x768xf32, #tpu.memory_space<vmem>>, vector<8x768xf32>,
    %c0_54 = arith.constant 0 : index
    %c128_55 = arith.constant 128 : index
    %46 = vector.load %arg13[%c0_54, %c128_55] : memref<8x1024xf32, #tpu.memory_space<vmem>>, vector<8x768xf32>
    %c32_56 = arith.constant 32 : index
    %c0_57 = arith.constant 0 : index
    %47 = vector.load %arg15[%c32_56, %c0_57] : memref<72x768xf32, #tpu.memory_space<vmem>>, vector<8x768xf32>
    tpu.vector_store %arg15[%c32_56, %c0_57], %46 {strides = array<i32>} : memref<72x768xf32, #tpu.memory_space<vmem>>, vector<8x768xf32>,
    %c0_58 = arith.constant 0 : index
    %c129_59 = arith.constant 129 : index
    %48 = vector.load %arg13[%c0_58, %c129_59] : memref<8x1024xf32, #tpu.memory_space<vmem>>, vector<8x768xf32>
    %c40_60 = arith.constant 40 : index
    %c0_61 = arith.constant 0 : index
    %49 = vector.load %arg15[%c40_60, %c0_61] : memref<72x768xf32, #tpu.memory_space<vmem>>, vector<8x768xf32>
    tpu.vector_store %arg15[%c40_60, %c0_61], %48 {strides = array<i32>} : memref<72x768xf32, #tpu.memory_space<vmem>>, vector<8x768xf32>,
    %c0_62 = arith.constant 0 : index
    %c146_63 = arith.constant 146 : index
    %50 = vector.load %arg13[%c0_62, %c146_63] : memref<8x1024xf32, #tpu.memory_space<vmem>>, vector<8x768xf32>
    %c48_64 = arith.constant 48 : index
    %c0_65 = arith.constant 0 : index
    %51 = vector.load %arg15[%c48_64, %c0_65] : memref<72x768xf32, #tpu.memory_space<vmem>>, vector<8x768xf32>
    tpu.vector_store %arg15[%c48_64, %c0_65], %50 {strides = array<i32>} : memref<72x768xf32, #tpu.memory_space<vmem>>, vector<8x768xf32>,
    %c0_66 = arith.constant 0 : index
    %c147_67 = arith.constant 147 : index
    %52 = vector.load %arg13[%c0_66, %c147_67] : memref<8x1024xf32, #tpu.memory_space<vmem>>, vector<8x768xf32>
    %c56_68 = arith.constant 56 : index
    %c0_69 = arith.constant 0 : index
    %53 = vector.load %arg15[%c56_68, %c0_69] : memref<72x768xf32, #tpu.memory_space<vmem>>, vector<8x768xf32>
    tpu.vector_store %arg15[%c56_68, %c0_69], %52 {strides = array<i32>} : memref<72x768xf32, #tpu.memory_space<vmem>>, vector<8x768xf32>,
    %c0_70 = arith.constant 0 : index
    %c148_71 = arith.constant 148 : index
    %54 = vector.load %arg13[%c0_70, %c148_71] : memref<8x1024xf32, #tpu.memory_space<vmem>>, vector<8x768xf32>
    %c64_72 = arith.constant 64 : index
    %c0_73 = arith.constant 0 : index
    %55 = vector.load %arg15[%c64_72, %c0_73] : memref<72x768xf32, #tpu.memory_space<vmem>>, vector<8x768xf32>
    tpu.vector_store %arg15[%c64_72, %c0_73], %54 {strides = array<i32>} : memref<72x768xf32, #tpu.memory_space<vmem>>, vector<8x768xf32>,
    %c0_74 = arith.constant 0 : index
    %c0_75 = arith.constant 0 : index
    %56 = vector.load %arg15[%c0_74, %c0_75] : memref<72x768xf32, #tpu.memory_space<vmem>>, vector<72x768xf32>
    %c0_76 = arith.constant 0 : index
    %c0_77 = arith.constant 0 : index
    %57 = vector.load %arg3[%c0_76, %c0_77] : memref<8x72xf32, #tpu.memory_space<vmem>>, vector<8x72xf32>
    %cst_78 = arith.constant dense<0.000000e+00> : vector<8x768xf32>
    %58 = tpu.matmul %57, %56, %cst_78 {dimension_numbers = #tpu.dot_dimension_numbers<[1], [0], [0], [1], [0, 0, 1, 1], [], []>} : vector<8x72xf32>, vector<72x768xf32>, vector<8x768xf32> -> vector<8x768xf32>
    %c0_79 = arith.constant 0 : index
    %c0_80 = arith.constant 0 : index
    %59 = vector.load %arg6[%c0_79, %c0_80] : memref<8x1xf32, #tpu.memory_space<vmem>>, vector<8x1xf32>
    %60 = vector.broadcast %59 : vector<8x1xf32> to vector<8x768xf32>
    %61 = arith.addf %58, %60 : vector<8x768xf32>
    %cst_81 = arith.constant 0.000000e+00 : f32
    %62 = vector.broadcast %cst_81 : f32 to vector<8x768xf32>
    %63 = arith.cmpf oge, %61, %62 : vector<8x768xf32>
    %cst_82 = arith.constant 1.000000e-01 : f32
    %64 = vector.broadcast %cst_82 : f32 to vector<8x768xf32>
    %65 = arith.mulf %64, %61 : vector<8x768xf32>
    %66 = arith.select %63, %61, %65 : vector<8x768xi1>, vector<8x768xf32>
    %c0_83 = arith.constant 0 : index
    %c0_84 = arith.constant 0 : index
    %67 = vector.load %arg11[%c0_83, %c0_84] : memref<8x768xf32, #tpu.memory_space<vmem>>, vector<8x768xf32>
    tpu.vector_store %arg11[%c0_83, %c0_84], %66 {strides = array<i32>} : memref<8x768xf32, #tpu.memory_space<vmem>>, vector<8x768xf32>,
    %c0_85 = arith.constant 0 : index
    %c0_86 = arith.constant 0 : index
    %68 = vector.load %arg9[%c0_85, %c0_86] : memref<1x768xf32, #tpu.memory_space<vmem>>, vector<1x768xf32>
    %69 = vector.broadcast %68 : vector<1x768xf32> to vector<8x768xf32>
    %70 = arith.mulf %66, %69 : vector<8x768xf32>
    %c0_87 = arith.constant 0 : index
    %c128_88 = arith.constant 128 : index
    %71 = vector.load %arg14[%c0_87, %c128_88] : memref<8x1024xf32, #tpu.memory_space<vmem>>, vector<8x768xf32>
    tpu.vector_store %arg14[%c0_87, %c128_88], %70 {strides = array<i32>} : memref<8x1024xf32, #tpu.memory_space<vmem>>, vector<8x768xf32>,
    %c0_89 = arith.constant 0 : index
    %c88 = arith.constant 88 : index
    %72 = vector.load %arg14[%c0_89, %c88] : memref<8x1024xf32, #tpu.memory_space<vmem>>, vector<8x768xf32>
    %c0_90 = arith.constant 0 : index
    %c0_91 = arith.constant 0 : index
    %73 = vector.load %arg15[%c0_90, %c0_91] : memref<72x768xf32, #tpu.memory_space<vmem>>, vector<8x768xf32>
    tpu.vector_store %arg15[%c0_90, %c0_91], %72 {strides = array<i32>} : memref<72x768xf32, #tpu.memory_space<vmem>>, vector<8x768xf32>,
    %c0_92 = arith.constant 0 : index
    %c90 = arith.constant 90 : index
    %74 = vector.load %arg14[%c0_92, %c90] : memref<8x1024xf32, #tpu.memory_space<vmem>>, vector<8x768xf32>
    %c8_93 = arith.constant 8 : index
    %c0_94 = arith.constant 0 : index
    %75 = vector.load %arg15[%c8_93, %c0_94] : memref<72x768xf32, #tpu.memory_space<vmem>>, vector<8x768xf32>
    tpu.vector_store %arg15[%c8_93, %c0_94], %74 {strides = array<i32>} : memref<72x768xf32, #tpu.memory_space<vmem>>, vector<8x768xf32>,
    %c0_95 = arith.constant 0 : index
    %c92 = arith.constant 92 : index
    %76 = vector.load %arg14[%c0_95, %c92] : memref<8x1024xf32, #tpu.memory_space<vmem>>, vector<8x768xf32>
    %c16_96 = arith.constant 16 : index
    %c0_97 = arith.constant 0 : index
    %77 = vector.load %arg15[%c16_96, %c0_97] : memref<72x768xf32, #tpu.memory_space<vmem>>, vector<8x768xf32>
    tpu.vector_store %arg15[%c16_96, %c0_97], %76 {strides = array<i32>} : memref<72x768xf32, #tpu.memory_space<vmem>>, vector<8x768xf32>,
    %c0_98 = arith.constant 0 : index
    %c126 = arith.constant 126 : index
    %78 = vector.load %arg14[%c0_98, %c126] : memref<8x1024xf32, #tpu.memory_space<vmem>>, vector<8x768xf32>
    %c24_99 = arith.constant 24 : index
    %c0_100 = arith.constant 0 : index
    %79 = vector.load %arg15[%c24_99, %c0_100] : memref<72x768xf32, #tpu.memory_space<vmem>>, vector<8x768xf32>
    tpu.vector_store %arg15[%c24_99, %c0_100], %78 {strides = array<i32>} : memref<72x768xf32, #tpu.memory_space<vmem>>, vector<8x768xf32>,
    %c0_101 = arith.constant 0 : index
    %c128_102 = arith.constant 128 : index
    %80 = vector.load %arg14[%c0_101, %c128_102] : memref<8x1024xf32, #tpu.memory_space<vmem>>, vector<8x768xf32>
    %c32_103 = arith.constant 32 : index
    %c0_104 = arith.constant 0 : index
    %81 = vector.load %arg15[%c32_103, %c0_104] : memref<72x768xf32, #tpu.memory_space<vmem>>, vector<8x768xf32>
    tpu.vector_store %arg15[%c32_103, %c0_104], %80 {strides = array<i32>} : memref<72x768xf32, #tpu.memory_space<vmem>>, vector<8x768xf32>,
    %c0_105 = arith.constant 0 : index
    %c130 = arith.constant 130 : index
    %82 = vector.load %arg14[%c0_105, %c130] : memref<8x1024xf32, #tpu.memory_space<vmem>>, vector<8x768xf32>
    %c40_106 = arith.constant 40 : index
    %c0_107 = arith.constant 0 : index
    %83 = vector.load %arg15[%c40_106, %c0_107] : memref<72x768xf32, #tpu.memory_space<vmem>>, vector<8x768xf32>
    tpu.vector_store %arg15[%c40_106, %c0_107], %82 {strides = array<i32>} : memref<72x768xf32, #tpu.memory_space<vmem>>, vector<8x768xf32>,
    %c0_108 = arith.constant 0 : index
    %c164 = arith.constant 164 : index
    %84 = vector.load %arg14[%c0_108, %c164] : memref<8x1024xf32, #tpu.memory_space<vmem>>, vector<8x768xf32>
    %c48_109 = arith.constant 48 : index
    %c0_110 = arith.constant 0 : index
    %85 = vector.load %arg15[%c48_109, %c0_110] : memref<72x768xf32, #tpu.memory_space<vmem>>, vector<8x768xf32>
    tpu.vector_store %arg15[%c48_109, %c0_110], %84 {strides = array<i32>} : memref<72x768xf32, #tpu.memory_space<vmem>>, vector<8x768xf32>,
    %c0_111 = arith.constant 0 : index
    %c166 = arith.constant 166 : index
    %86 = vector.load %arg14[%c0_111, %c166] : memref<8x1024xf32, #tpu.memory_space<vmem>>, vector<8x768xf32>
    %c56_112 = arith.constant 56 : index
    %c0_113 = arith.constant 0 : index
    %87 = vector.load %arg15[%c56_112, %c0_113] : memref<72x768xf32, #tpu.memory_space<vmem>>, vector<8x768xf32>
    tpu.vector_store %arg15[%c56_112, %c0_113], %86 {strides = array<i32>} : memref<72x768xf32, #tpu.memory_space<vmem>>, vector<8x768xf32>,
    %c0_114 = arith.constant 0 : index
    %c168 = arith.constant 168 : index
    %88 = vector.load %arg14[%c0_114, %c168] : memref<8x1024xf32, #tpu.memory_space<vmem>>, vector<8x768xf32>
    %c64_115 = arith.constant 64 : index
    %c0_116 = arith.constant 0 : index
    %89 = vector.load %arg15[%c64_115, %c0_116] : memref<72x768xf32, #tpu.memory_space<vmem>>, vector<8x768xf32>
    tpu.vector_store %arg15[%c64_115, %c0_116], %88 {strides = array<i32>} : memref<72x768xf32, #tpu.memory_space<vmem>>, vector<8x768xf32>,
    %c0_117 = arith.constant 0 : index
    %c0_118 = arith.constant 0 : index
    %90 = vector.load %arg15[%c0_117, %c0_118] : memref<72x768xf32, #tpu.memory_space<vmem>>, vector<72x768xf32>
    %c0_119 = arith.constant 0 : index
    %c0_120 = arith.constant 0 : index
    %91 = vector.load %arg4[%c0_119, %c0_120] : memref<8x72xf32, #tpu.memory_space<vmem>>, vector<8x72xf32>
    %cst_121 = arith.constant dense<0.000000e+00> : vector<8x768xf32>
    %92 = tpu.matmul %91, %90, %cst_121 {dimension_numbers = #tpu.dot_dimension_numbers<[1], [0], [0], [1], [0, 0, 1, 1], [], []>} : vector<8x72xf32>, vector<72x768xf32>, vector<8x768xf32> -> vector<8x768xf32>
    %c0_122 = arith.constant 0 : index
    %c0_123 = arith.constant 0 : index
    %93 = vector.load %arg7[%c0_122, %c0_123] : memref<8x1xf32, #tpu.memory_space<vmem>>, vector<8x1xf32>
    %94 = vector.broadcast %93 : vector<8x1xf32> to vector<8x768xf32>
    %95 = arith.addf %92, %94 : vector<8x768xf32>
    %cst_124 = arith.constant 0.000000e+00 : f32
    %96 = vector.broadcast %cst_124 : f32 to vector<8x768xf32>
    %97 = arith.cmpf oge, %95, %96 : vector<8x768xf32>
    %cst_125 = arith.constant 1.000000e-01 : f32
    %98 = vector.broadcast %cst_125 : f32 to vector<8x768xf32>
    %99 = arith.mulf %98, %95 : vector<8x768xf32>
    %100 = arith.select %97, %95, %99 : vector<8x768xi1>, vector<8x768xf32>
    %c0_126 = arith.constant 0 : index
    %c0_127 = arith.constant 0 : index
    %101 = vector.load %arg12[%c0_126, %c0_127] : memref<8x768xf32, #tpu.memory_space<vmem>>, vector<8x768xf32>
    tpu.vector_store %arg12[%c0_126, %c0_127], %100 {strides = array<i32>} : memref<8x768xf32, #tpu.memory_space<vmem>>, vector<8x768xf32>,
    return
  }
  func.func @transform_0(%arg0: i32) -> (i32, i32) {
    %c0_i32 = arith.constant 0 : i32
    %c0_i32_0 = arith.constant 0 : i32
    %c0_i32_1 = arith.constant 0 : i32
    return %c0_i32, %c0_i32_0 : i32, i32
  }
  func.func @transform_1(%arg0: i32) -> (i32, i32) {
    %c0_i32 = arith.constant 0 : i32
    %c0_i32_0 = arith.constant 0 : i32
    %c0_i32_1 = arith.constant 0 : i32
    return %c0_i32, %c0_i32_0 : i32, i32
  }
  func.func @transform_2(%arg0: i32) -> (i32, i32) {
    %c0_i32 = arith.constant 0 : i32
    %c0_i32_0 = arith.constant 0 : i32
    %c0_i32_1 = arith.constant 0 : i32
    return %c0_i32, %c0_i32_0 : i32, i32
  }
  func.func @transform_3(%arg0: i32) -> (i32, i32) {
    %c0_i32 = arith.constant 0 : i32
    %c0_i32_0 = arith.constant 0 : i32
    %c0_i32_1 = arith.constant 0 : i32
    return %c0_i32, %c0_i32_0 : i32, i32
  }
  func.func @transform_4(%arg0: i32) -> (i32, i32) {
    %c0_i32 = arith.constant 0 : i32
    %c0_i32_0 = arith.constant 0 : i32
    %c0_i32_1 = arith.constant 0 : i32
    return %c0_i32, %c0_i32_0 : i32, i32
  }
  func.func @transform_5(%arg0: i32) -> (i32, i32) {
    %c0_i32 = arith.constant 0 : i32
    %c0_i32_0 = arith.constant 0 : i32
    %c0_i32_1 = arith.constant 0 : i32
    return %c0_i32, %c0_i32_0 : i32, i32
  }
  func.func @transform_6(%arg0: i32) -> (i32, i32) {
    %c0_i32 = arith.constant 0 : i32
    %c0_i32_0 = arith.constant 0 : i32
    %c0_i32_1 = arith.constant 0 : i32
    return %c0_i32, %c0_i32_0 : i32, i32
  }
  func.func @transform_7(%arg0: i32) -> (i32, i32) {
    %c0_i32 = arith.constant 0 : i32
    %c0_i32_0 = arith.constant 0 : i32
    %c0_i32_1 = arith.constant 0 : i32
    return %c0_i32, %c0_i32_0 : i32, i32
  }
  func.func @transform_8(%arg0: i32) -> (i32, i32) {
    %c0_i32 = arith.constant 0 : i32
    %c0_i32_0 = arith.constant 0 : i32
    %c0_i32_1 = arith.constant 0 : i32
    return %c0_i32, %c0_i32_0 : i32, i32
  }
  func.func @transform_9(%arg0: i32) -> (i32, i32) {
    %c0_i32 = arith.constant 0 : i32
    %c0_i32_0 = arith.constant 0 : i32
    %c0_i32_1 = arith.constant 0 : i32
    return %c0_i32, %c0_i32_0 : i32, i32
  }
  func.func @transform_10(%arg0: i32) -> (i32, i32) {
    %c0_i32 = arith.constant 0 : i32
    %c0_i32_0 = arith.constant 0 : i32
    %c0_i32_1 = arith.constant 0 : i32
    return %c0_i32, %c0_i32_0 : i32, i32
  }
  func.func @transform_11(%arg0: i32) -> (i32, i32) {
    %c0_i32 = arith.constant 0 : i32
    %c0_i32_0 = arith.constant 0 : i32
    %c0_i32_1 = arith.constant 0 : i32
    return %c0_i32, %c0_i32_0 : i32, i32
  }
}

</mosaic_0001>

<llo_original>
// kernel: _lambda_.1
$region0: #{_lambda_.1}
  #allocation0 [shape = 'u32[]', space=smem, size = 0x4, offset = 0x4, fixed_abs, tag = 'smem constant byte address 0x4 - core index']
  #allocation1 [shape = 'u32[144,128]{1,0:T(1,128)}', space=vmem, size = 0x12000, scoped, tag = 'internal scratch']
  #allocation2 [shape = 'f32[8,1024]{1,0:T(8,128)}', space=vmem, size = 0x8000, scoped, tag = 'scratch operand']
  #allocation3 [shape = 'f32[8,1024]{1,0:T(8,128)}', space=vmem, size = 0x8000, scoped, tag = 'scratch operand']
  #allocation4 [shape = 'f32[72,768]{1,0:T(8,128)}', space=vmem, size = 0x36000, scoped, tag = 'scratch operand']
  %s0 = inlined_call_operand.vmem [shape: f32[8,1024], index: 0, kind: input, shape index: {}]
  %s1 = inlined_call_operand.vmem [shape: f32[8,72], index: 1, kind: input, shape index: {}]
  %s2 = inlined_call_operand.vmem [shape: f32[8,72], index: 2, kind: input, shape index: {}]
  %s3 = inlined_call_operand.vmem [shape: f32[8,72], index: 3, kind: input, shape index: {}]
  %s4 = inlined_call_operand.vmem [shape: f32[8,1], index: 4, kind: input, shape index: {}]
  %s5 = inlined_call_operand.vmem [shape: f32[8,1], index: 5, kind: input, shape index: {}]
  %s6 = inlined_call_operand.vmem [shape: f32[8,1], index: 6, kind: input, shape index: {}]
  %s7 = inlined_call_operand.vmem [shape: f32[1,768], index: 7, kind: input, shape index: {}]
  %s8 = inlined_call_operand.vmem [shape: f32[1,768], index: 8, kind: input, shape index: {}]
  %s9 = inlined_call_operand.vmem [shape: f32[8,768], index: 9, kind: output, shape index: {0}]
  %s10 = inlined_call_operand.vmem [shape: f32[8,768], index: 10, kind: output, shape index: {1}]
  %s11 = inlined_call_operand.vmem [shape: f32[8,768], index: 11, kind: output, shape index: {2}]
  %12 = xla_tuple %s9, %s10, %s11
  %s13 = sld [smem:[#allocation0]]
  $region62: #{_lambda_.1} parent=0
    _
  %s15 = ssub.s32 1, %s13
  %s16 = scalar_select 0, %s15, %s13
  // Predicated region
  $region2: #{_lambda_.1} parent=0 // pred_check
    _
  $region3: #{_lambda_.1} parent=0 // pred_check_branch
    %18 = sbr.rel (0) target = $region5
  $region4: #{_lambda_.1} parent=0 // pred_region
    _
  $region5: #{_lambda_.1} parent=0 // pred_fallthru
    _
  // Predicated region
  $region6: #{_lambda_.1} parent=0 // pred_check
    _
  $region7: #{_lambda_.1} parent=0 // pred_check_branch
    %20 = sbr.rel (0) target = $region9
  $region8: #{_lambda_.1} parent=0 // pred_region
    _
  $region9: #{_lambda_.1} parent=0 // pred_fallthru
    _
  // Predicated region
  $region10: #{_lambda_.1} parent=0 // pred_check
    _
  $region11: #{_lambda_.1} parent=0 // pred_check_branch
    %22 = sbr.rel (0) target = $region13
  $region12: #{_lambda_.1} parent=0 // pred_region
    _
  $region13: #{_lambda_.1} parent=0 // pred_fallthru
    _
  // Predicated region
  $region14: #{_lambda_.1} parent=0 // pred_check
    _
  $region15: #{_lambda_.1} parent=0 // pred_check_branch
    %24 = sbr.rel (0) target = $region17
  $region16: #{_lambda_.1} parent=0 // pred_region
    _
  $region17: #{_lambda_.1} parent=0 // pred_fallthru
    _
  // Predicated region
  $region18: #{_lambda_.1} parent=0 // pred_check
    _
  $region19: #{_lambda_.1} parent=0 // pred_check_branch
    %26 = sbr.rel (0) target = $region21
  $region20: #{_lambda_.1} parent=0 // pred_region
    _
  $region21: #{_lambda_.1} parent=0 // pred_fallthru
    _
  // Predicated region
  $region22: #{_lambda_.1} parent=0 // pred_check
    _
  $region23: #{_lambda_.1} parent=0 // pred_check_branch
    %28 = sbr.rel (0) target = $region25
  $region24: #{_lambda_.1} parent=0 // pred_region
    _
  $region25: #{_lambda_.1} parent=0 // pred_fallthru
    _
  // Predicated region
  $region26: #{_lambda_.1} parent=0 // pred_check
    _
  $region27: #{_lambda_.1} parent=0 // pred_check_branch
    %30 = sbr.rel (0) target = $region29
  $region28: #{_lambda_.1} parent=0 // pred_region
    _
  $region29: #{_lambda_.1} parent=0 // pred_fallthru
    _
  // Predicated region
  $region30: #{_lambda_.1} parent=0 // pred_check
    _
  $region31: #{_lambda_.1} parent=0 // pred_check_branch
    %32 = sbr.rel (0) target = $region33
  $region32: #{_lambda_.1} parent=0 // pred_region
    _
  $region33: #{_lambda_.1} parent=0 // pred_fallthru
    _
  // Predicated region
  $region34: #{_lambda_.1} parent=0 // pred_check
    _
  $region35: #{_lambda_.1} parent=0 // pred_check_branch
    %34 = sbr.rel (0) target = $region37
  $region36: #{_lambda_.1} parent=0 // pred_region
    _
  $region37: #{_lambda_.1} parent=0 // pred_fallthru
    _
  %35 = vst [vmem:[#allocation2] sm:$0xff] 0.0
  %36 = vst [vmem:[#allocation2 + $0x8] sm:$0xff] 0.0
  %37 = vst [vmem:[#allocation2 + $0x10] sm:$0xff] 0.0
  %38 = vst [vmem:[#allocation2 + $0x18] sm:$0xff] 0.0
  %39 = vst [vmem:[#allocation2 + $0x20] sm:$0xff] 0.0
  %40 = vst [vmem:[#allocation2 + $0x28] sm:$0xff] 0.0
  %41 = vst [vmem:[#allocation2 + $0x30] sm:$0xff] 0.0
  %42 = vst [vmem:[#allocation2 + $0x38] sm:$0xff] 0.0
  %43 = vst [vmem:[#allocation3] sm:$0xff] 0.0
  %44 = vst [vmem:[#allocation3 + $0x8] sm:$0xff] 0.0
  %45 = vst [vmem:[#allocation3 + $0x10] sm:$0xff] 0.0
  %46 = vst [vmem:[#allocation3 + $0x18] sm:$0xff] 0.0
  %47 = vst [vmem:[#allocation3 + $0x20] sm:$0xff] 0.0
  %48 = vst [vmem:[#allocation3 + $0x28] sm:$0xff] 0.0
  %49 = vst [vmem:[#allocation3 + $0x30] sm:$0xff] 0.0
  %50 = vst [vmem:[#allocation3 + $0x38] sm:$0xff] 0.0
  %v51 = vld [vmem:[%s0] sm:$0xff]
  %v52 = vld [vmem:[%s0 + $0x8] sm:$0xff]
  %v53 = vld [vmem:[%s0 + $0x10] sm:$0xff]
  %v54 = vld [vmem:[%s0 + $0x18] sm:$0xff]
  %v55 = vld [vmem:[%s0 + $0x20] sm:$0xff]
  %v56 = vld [vmem:[%s0 + $0x28] sm:$0xff]
  %v57 = vld [vmem:[%s0 + $0x30] sm:$0xff]
  %65 = vrot.lane.b32.xlu0 %v51, 20
  %v66 = vpop.permute.xlu0 %65
  %67 = vrot.lane.b32.xlu0 %v52, 20
  %v68 = vpop.permute.xlu0 %67
  %69 = vrot.lane.b32.xlu0 %v53, 20
  %v70 = vpop.permute.xlu0 %69
  %71 = vrot.lane.b32.xlu0 %v54, 20
  %v72 = vpop.permute.xlu0 %71
  %73 = vrot.lane.b32.xlu0 %v55, 20
  %v74 = vpop.permute.xlu0 %73
  %75 = vrot.lane.b32.xlu0 %v56, 20
  %v76 = vpop.permute.xlu0 %75
  %77 = vrot.lane.b32.xlu0 %v57, 20
  %v78 = vpop.permute.xlu0 %77
  %vm79 = vcmask 162816
  %v80 = vsel %vm79, %v66, %v68
  %v81 = vsel %vm79, %v68, %v70
  %v82 = vsel %vm79, %v70, %v72
  %v83 = vsel %vm79, %v72, %v74
  %v84 = vsel %vm79, %v74, %v76
  %v85 = vsel %vm79, %v76, %v78
  %92 = vst [vmem:[#allocation4] sm:$0xff] %v80
  %93 = vst [vmem:[#allocation4 + $0x8] sm:$0xff] %v81
  %94 = vst [vmem:[#allocation4 + $0x10] sm:$0xff] %v82
  %95 = vst [vmem:[#allocation4 + $0x18] sm:$0xff] %v83
  %96 = vst [vmem:[#allocation4 + $0x20] sm:$0xff] %v84
  %97 = vst [vmem:[#allocation4 + $0x28] sm:$0xff] %v85
  %v98 = vld [vmem:[%s0] sm:$0xff]
  %v99 = vld [vmem:[%s0 + $0x8] sm:$0xff]
  %v100 = vld [vmem:[%s0 + $0x10] sm:$0xff]
  %v101 = vld [vmem:[%s0 + $0x18] sm:$0xff]
  %v102 = vld [vmem:[%s0 + $0x20] sm:$0xff]
  %v103 = vld [vmem:[%s0 + $0x28] sm:$0xff]
  %v104 = vld [vmem:[%s0 + $0x30] sm:$0xff]
  %112 = vrot.lane.b32.xlu0 %v98, 19
  %v113 = vpop.permute.xlu0 %112
  %114 = vrot.lane.b32.xlu0 %v99, 19
  %v115 = vpop.permute.xlu0 %114
  %116 = vrot.lane.b32.xlu0 %v100, 19
  %v117 = vpop.permute.xlu0 %116
  %118 = vrot.lane.b32.xlu0 %v101, 19
  %v119 = vpop.permute.xlu0 %118
  %120 = vrot.lane.b32.xlu0 %v102, 19
  %v121 = vpop.permute.xlu0 %120
  %122 = vrot.lane.b32.xlu0 %v103, 19
  %v123 = vpop.permute.xlu0 %122
  %124 = vrot.lane.b32.xlu0 %v104, 19
  %v125 = vpop.permute.xlu0 %124
  %vm126 = vcmask 154624
  %v127 = vsel %vm126, %v113, %v115
  %v128 = vsel %vm126, %v115, %v117
  %v129 = vsel %vm126, %v117, %v119
  %v130 = vsel %vm126, %v119, %v121
  %v131 = vsel %vm126, %v121, %v123
  %v132 = vsel %vm126, %v123, %v125
  %139 = vst [vmem:[#allocation4 + $0x30] sm:$0xff] %v127
  %140 = vst [vmem:[#allocation4 + $0x38] sm:$0xff] %v128
  %141 = vst [vmem:[#allocation4 + $0x40] sm:$0xff] %v129
  %142 = vst [vmem:[#allocation4 + $0x48] sm:$0xff] %v130
  %143 = vst [vmem:[#allocation4 + $0x50] sm:$0xff] %v131
  %144 = vst [vmem:[#allocation4 + $0x58] sm:$0xff] %v132
  %v145 = vld [vmem:[%s0] sm:$0xff]
  %v146 = vld [vmem:[%s0 + $0x8] sm:$0xff]
  %v147 = vld [vmem:[%s0 + $0x10] sm:$0xff]
  %v148 = vld [vmem:[%s0 + $0x18] sm:$0xff]
  %v149 = vld [vmem:[%s0 + $0x20] sm:$0xff]
  %v150 = vld [vmem:[%s0 + $0x28] sm:$0xff]
  %v151 = vld [vmem:[%s0 + $0x30] sm:$0xff]
  %159 = vrot.lane.b32.xlu0 %v145, 18
  %v160 = vpop.permute.xlu0 %159
  %161 = vrot.lane.b32.xlu0 %v146, 18
  %v162 = vpop.permute.xlu0 %161
  %163 = vrot.lane.b32.xlu0 %v147, 18
  %v164 = vpop.permute.xlu0 %163
  %165 = vrot.lane.b32.xlu0 %v148, 18
  %v166 = vpop.permute.xlu0 %165
  %167 = vrot.lane.b32.xlu0 %v149, 18
  %v168 = vpop.permute.xlu0 %167
  %169 = vrot.lane.b32.xlu0 %v150, 18
  %v170 = vpop.permute.xlu0 %169
  %171 = vrot.lane.b32.xlu0 %v151, 18
  %v172 = vpop.permute.xlu0 %171
  %vm173 = vcmask 146432
  %v174 = vsel %vm173, %v160, %v162
  %v175 = vsel %vm173, %v162, %v164
  %v176 = vsel %vm173, %v164, %v166
  %v177 = vsel %vm173, %v166, %v168
  %v178 = vsel %vm173, %v168, %v170
  %v179 = vsel %vm173, %v170, %v172
  %186 = vst [vmem:[#allocation4 + $0x60] sm:$0xff] %v174
  %187 = vst [vmem:[#allocation4 + $0x68] sm:$0xff] %v175
  %188 = vst [vmem:[#allocation4 + $0x70] sm:$0xff] %v176
  %189 = vst [vmem:[#allocation4 + $0x78] sm:$0xff] %v177
  %190 = vst [vmem:[#allocation4 + $0x80] sm:$0xff] %v178
  %191 = vst [vmem:[#allocation4 + $0x88] sm:$0xff] %v179
  %v192 = vld [vmem:[%s0] sm:$0xff]
  %v193 = vld [vmem:[%s0 + $0x8] sm:$0xff]
  %v194 = vld [vmem:[%s0 + $0x10] sm:$0xff]
  %v195 = vld [vmem:[%s0 + $0x18] sm:$0xff]
  %v196 = vld [vmem:[%s0 + $0x20] sm:$0xff]
  %v197 = vld [vmem:[%s0 + $0x28] sm:$0xff]
  %v198 = vld [vmem:[%s0 + $0x30] sm:$0xff]
  %206 = vrot.lane.b32.xlu0 %v192, 1
  %v207 = vpop.permute.xlu0 %206
  %208 = vrot.lane.b32.xlu0 %v193, 1
  %v209 = vpop.permute.xlu0 %208
  %210 = vrot.lane.b32.xlu0 %v194, 1
  %v211 = vpop.permute.xlu0 %210
  %212 = vrot.lane.b32.xlu0 %v195, 1
  %v213 = vpop.permute.xlu0 %212
  %214 = vrot.lane.b32.xlu0 %v196, 1
  %v215 = vpop.permute.xlu0 %214
  %216 = vrot.lane.b32.xlu0 %v197, 1
  %v217 = vpop.permute.xlu0 %216
  %218 = vrot.lane.b32.xlu0 %v198, 1
  %v219 = vpop.permute.xlu0 %218
  %vm220 = vcmask 7168
  %v221 = vsel %vm220, %v207, %v209
  %v222 = vsel %vm220, %v209, %v211
  %v223 = vsel %vm220, %v211, %v213
  %v224 = vsel %vm220, %v213, %v215
  %v225 = vsel %vm220, %v215, %v217
  %v226 = vsel %vm220, %v217, %v219
  %233 = vst [vmem:[#allocation4 + $0x90] sm:$0xff] %v221
  %234 = vst [vmem:[#allocation4 + $0x98] sm:$0xff] %v222
  %235 = vst [vmem:[#allocation4 + $0xa0] sm:$0xff] %v223
  %236 = vst [vmem:[#allocation4 + $0xa8] sm:$0xff] %v224
  %237 = vst [vmem:[#allocation4 + $0xb0] sm:$0xff] %v225
  %238 = vst [vmem:[#allocation4 + $0xb8] sm:$0xff] %v226
  %v239 = vld [vmem:[%s0 + $0x8] sm:$0xff]
  %v240 = vld [vmem:[%s0 + $0x10] sm:$0xff]
  %v241 = vld [vmem:[%s0 + $0x18] sm:$0xff]
  %v242 = vld [vmem:[%s0 + $0x20] sm:$0xff]
  %v243 = vld [vmem:[%s0 + $0x28] sm:$0xff]
  %v244 = vld [vmem:[%s0 + $0x30] sm:$0xff]
  %245 = vst [vmem:[#allocation4 + $0xc0] sm:$0xff] %v239
  %246 = vst [vmem:[#allocation4 + $0xc8] sm:$0xff] %v240
  %247 = vst [vmem:[#allocation4 + $0xd0] sm:$0xff] %v241
  %248 = vst [vmem:[#allocation4 + $0xd8] sm:$0xff] %v242
  %249 = vst [vmem:[#allocation4 + $0xe0] sm:$0xff] %v243
  %250 = vst [vmem:[#allocation4 + $0xe8] sm:$0xff] %v244
  %v251 = vld [vmem:[%s0 + $0x8] sm:$0xff]
  %v252 = vld [vmem:[%s0 + $0x10] sm:$0xff]
  %v253 = vld [vmem:[%s0 + $0x18] sm:$0xff]
  %v254 = vld [vmem:[%s0 + $0x20] sm:$0xff]
  %v255 = vld [vmem:[%s0 + $0x28] sm:$0xff]
  %v256 = vld [vmem:[%s0 + $0x30] sm:$0xff]
  %v257 = vld [vmem:[%s0 + $0x38] sm:$0xff]
  %265 = vrot.lane.b32.xlu0 %v251, 127
  %v266 = vpop.permute.xlu0 %265
  %267 = vrot.lane.b32.xlu0 %v252, 127
  %v268 = vpop.permute.xlu0 %267
  %269 = vrot.lane.b32.xlu0 %v253, 127
  %v270 = vpop.permute.xlu0 %269
  %271 = vrot.lane.b32.xlu0 %v254, 127
  %v272 = vpop.permute.xlu0 %271
  %273 = vrot.lane.b32.xlu0 %v255, 127
  %v274 = vpop.permute.xlu0 %273
  %275 = vrot.lane.b32.xlu0 %v256, 127
  %v276 = vpop.permute.xlu0 %275
  %277 = vrot.lane.b32.xlu0 %v257, 127
  %v278 = vpop.permute.xlu0 %277
  %vm279 = vcmask 1039360
  %v280 = vsel %vm279, %v266, %v268
  %v281 = vsel %vm279, %v268, %v270
  %v282 = vsel %vm279, %v270, %v272
  %v283 = vsel %vm279, %v272, %v274
  %v284 = vsel %vm279, %v274, %v276
  %v285 = vsel %vm279, %v276, %v278
  %292 = vst [vmem:[#allocation4 + $0xf0] sm:$0xff] %v280
  %293 = vst [vmem:[#allocation4 + $0xf8] sm:$0xff] %v281
  %294 = vst [vmem:[#allocation4 + $0x100] sm:$0xff] %v282
  %295 = vst [vmem:[#allocation4 + $0x108] sm:$0xff] %v283
  %296 = vst [vmem:[#allocation4 + $0x110] sm:$0xff] %v284
  %297 = vst [vmem:[#allocation4 + $0x118] sm:$0xff] %v285
  %v298 = vld [vmem:[%s0 + $0x8] sm:$0xff]
  %v299 = vld [vmem:[%s0 + $0x10] sm:$0xff]
  %v300 = vld [vmem:[%s0 + $0x18] sm:$0xff]
  %v301 = vld [vmem:[%s0 + $0x20] sm:$0xff]
  %v302 = vld [vmem:[%s0 + $0x28] sm:$0xff]
  %v303 = vld [vmem:[%s0 + $0x30] sm:$0xff]
  %v304 = vld [vmem:[%s0 + $0x38] sm:$0xff]
  %312 = vrot.lane.b32.xlu0 %v298, 110
  %v313 = vpop.permute.xlu0 %312
  %314 = vrot.lane.b32.xlu0 %v299, 110
  %v315 = vpop.permute.xlu0 %314
  %316 = vrot.lane.b32.xlu0 %v300, 110
  %v317 = vpop.permute.xlu0 %316
  %318 = vrot.lane.b32.xlu0 %v301, 110
  %v319 = vpop.permute.xlu0 %318
  %320 = vrot.lane.b32.xlu0 %v302, 110
  %v321 = vpop.permute.xlu0 %320
  %322 = vrot.lane.b32.xlu0 %v303, 110
  %v323 = vpop.permute.xlu0 %322
  %324 = vrot.lane.b32.xlu0 %v304, 110
  %v325 = vpop.permute.xlu0 %324
  %vm326 = vcmask 900096
  %v327 = vsel %vm326, %v313, %v315
  %v328 = vsel %vm326, %v315, %v317
  %v329 = vsel %vm326, %v317, %v319
  %v330 = vsel %vm326, %v319, %v321
  %v331 = vsel %vm326, %v321, %v323
  %v332 = vsel %vm326, %v323, %v325
  %339 = vst [vmem:[#allocation4 + $0x120] sm:$0xff] %v327
  %340 = vst [vmem:[#allocation4 + $0x128] sm:$0xff] %v328
  %341 = vst [vmem:[#allocation4 + $0x130] sm:$0xff] %v329
  %342 = vst [vmem:[#allocation4 + $0x138] sm:$0xff] %v330
  %343 = vst [vmem:[#allocation4 + $0x140] sm:$0xff] %v331
  %344 = vst [vmem:[#allocation4 + $0x148] sm:$0xff] %v332
  %v345 = vld [vmem:[%s0 + $0x8] sm:$0xff]
  %v346 = vld [vmem:[%s0 + $0x10] sm:$0xff]
  %v347 = vld [vmem:[%s0 + $0x18] sm:$0xff]
  %v348 = vld [vmem:[%s0 + $0x20] sm:$0xff]
  %v349 = vld [vmem:[%s0 + $0x28] sm:$0xff]
  %v350 = vld [vmem:[%s0 + $0x30] sm:$0xff]
  %v351 = vld [vmem:[%s0 + $0x38] sm:$0xff]
  %359 = vrot.lane.b32.xlu0 %v345, 109
  %v360 = vpop.permute.xlu0 %359
  %361 = vrot.lane.b32.xlu0 %v346, 109
  %v362 = vpop.permute.xlu0 %361
  %363 = vrot.lane.b32.xlu0 %v347, 109
  %v364 = vpop.permute.xlu0 %363
  %365 = vrot.lane.b32.xlu0 %v348, 109
  %v366 = vpop.permute.xlu0 %365
  %367 = vrot.lane.b32.xlu0 %v349, 109
  %v368 = vpop.permute.xlu0 %367
  %369 = vrot.lane.b32.xlu0 %v350, 109
  %v370 = vpop.permute.xlu0 %369
  %371 = vrot.lane.b32.xlu0 %v351, 109
  %v372 = vpop.permute.xlu0 %371
  %vm373 = vcmask 891904
  %v374 = vsel %vm373, %v360, %v362
  %v375 = vsel %vm373, %v362, %v364
  %v376 = vsel %vm373, %v364, %v366
  %v377 = vsel %vm373, %v366, %v368
  %v378 = vsel %vm373, %v368, %v370
  %v379 = vsel %vm373, %v370, %v372
  %386 = vst [vmem:[#allocation4 + $0x150] sm:$0xff] %v374
  %387 = vst [vmem:[#allocation4 + $0x158] sm:$0xff] %v375
  %388 = vst [vmem:[#allocation4 + $0x160] sm:$0xff] %v376
  %389 = vst [vmem:[#allocation4 + $0x168] sm:$0xff] %v377
  %390 = vst [vmem:[#allocation4 + $0x170] sm:$0xff] %v378
  %391 = vst [vmem:[#allocation4 + $0x178] sm:$0xff] %v379
  %v392 = vld [vmem:[%s0 + $0x8] sm:$0xff]
  %v393 = vld [vmem:[%s0 + $0x10] sm:$0xff]
  %v394 = vld [vmem:[%s0 + $0x18] sm:$0xff]
  %v395 = vld [vmem:[%s0 + $0x20] sm:$0xff]
  %v396 = vld [vmem:[%s0 + $0x28] sm:$0xff]
  %v397 = vld [vmem:[%s0 + $0x30] sm:$0xff]
  %v398 = vld [vmem:[%s0 + $0x38] sm:$0xff]
  %406 = vrot.lane.b32.xlu0 %v392, 108
  %v407 = vpop.permute.xlu0 %406
  %408 = vrot.lane.b32.xlu0 %v393, 108
  %v409 = vpop.permute.xlu0 %408
  %410 = vrot.lane.b32.xlu0 %v394, 108
  %v411 = vpop.permute.xlu0 %410
  %412 = vrot.lane.b32.xlu0 %v395, 108
  %v413 = vpop.permute.xlu0 %412
  %414 = vrot.lane.b32.xlu0 %v396, 108
  %v415 = vpop.permute.xlu0 %414
  %416 = vrot.lane.b32.xlu0 %v397, 108
  %v417 = vpop.permute.xlu0 %416
  %418 = vrot.lane.b32.xlu0 %v398, 108
  %v419 = vpop.permute.xlu0 %418
  %vm420 = vcmask 883712
  %v421 = vsel %vm420, %v407, %v409
  %v422 = vsel %vm420, %v409, %v411
  %v423 = vsel %vm420, %v411, %v413
  %v424 = vsel %vm420, %v413, %v415
  %v425 = vsel %vm420, %v415, %v417
  %v426 = vsel %vm420, %v417, %v419
  %433 = vst [vmem:[#allocation4 + $0x180] sm:$0xff] %v421
  %434 = vst [vmem:[#allocation4 + $0x188] sm:$0xff] %v422
  %435 = vst [vmem:[#allocation4 + $0x190] sm:$0xff] %v423
  %436 = vst [vmem:[#allocation4 + $0x198] sm:$0xff] %v424
  %437 = vst [vmem:[#allocation4 + $0x1a0] sm:$0xff] %v425
  %438 = vst [vmem:[#allocation4 + $0x1a8] sm:$0xff] %v426
  %v439 = vld [vmem:[#allocation4] sm:$0xff]
  %v440 = vld [vmem:[#allocation4 + $0x8] sm:$0xff]
  %v441 = vld [vmem:[#allocation4 + $0x10] sm:$0xff]
  %v442 = vld [vmem:[#allocation4 + $0x18] sm:$0xff]
  %v443 = vld [vmem:[#allocation4 + $0x20] sm:$0xff]
  %v444 = vld [vmem:[#allocation4 + $0x28] sm:$0xff]
  %v445 = vld [vmem:[#allocation4 + $0x30] sm:$0xff]
  %v446 = vld [vmem:[#allocation4 + $0x38] sm:$0xff]
  %v447 = vld [vmem:[#allocation4 + $0x40] sm:$0xff]
  %v448 = vld [vmem:[#allocation4 + $0x48] sm:$0xff]
  %v449 = vld [vmem:[#allocation4 + $0x50] sm:$0xff]
  %v450 = vld [vmem:[#allocation4 + $0x58] sm:$0xff]
  %v451 = vld [vmem:[#allocation4 + $0x60] sm:$0xff]
  %v452 = vld [vmem:[#allocation4 + $0x68] sm:$0xff]
  %v453 = vld [vmem:[#allocation4 + $0x70] sm:$0xff]
  %v454 = vld [vmem:[#allocation4 + $0x78] sm:$0xff]
  %v455 = vld [vmem:[#allocation4 + $0x80] sm:$0xff]
  %v456 = vld [vmem:[#allocation4 + $0x88] sm:$0xff]
  %v457 = vld [vmem:[#allocation4 + $0x90] sm:$0xff]
  %v458 = vld [vmem:[#allocation4 + $0x98] sm:$0xff]
  %v459 = vld [vmem:[#allocation4 + $0xa0] sm:$0xff]
  %v460 = vld [vmem:[#allocation4 + $0xa8] sm:$0xff]
  %v461 = vld [vmem:[#allocation4 + $0xb0] sm:$0xff]
  %v462 = vld [vmem:[#allocation4 + $0xb8] sm:$0xff]
  %v463 = vld [vmem:[#allocation4 + $0xc0] sm:$0xff]
  %v464 = vld [vmem:[#allocation4 + $0xc8] sm:$0xff]
  %v465 = vld [vmem:[#allocation4 + $0xd0] sm:$0xff]
  %v466 = vld [vmem:[#allocation4 + $0xd8] sm:$0xff]
  %v467 = vld [vmem:[#allocation4 + $0xe0] sm:$0xff]
  %v468 = vld [vmem:[#allocation4 + $0xe8] sm:$0xff]
  %v469 = vld [vmem:[#allocation4 + $0xf0] sm:$0xff]
  %v470 = vld [vmem:[#allocation4 + $0xf8] sm:$0xff]
  %v471 = vld [vmem:[#allocation4 + $0x100] sm:$0xff]
  %v472 = vld [vmem:[#allocation4 + $0x108] sm:$0xff]
  %v473 = vld [vmem:[#allocation4 + $0x110] sm:$0xff]
  %v474 = vld [vmem:[#allocation4 + $0x118] sm:$0xff]
  %v475 = vld [vmem:[#allocation4 + $0x120] sm:$0xff]
  %v476 = vld [vmem:[#allocation4 + $0x128] sm:$0xff]
  %v477 = vld [vmem:[#allocation4 + $0x130] sm:$0xff]
  %v478 = vld [vmem:[#allocation4 + $0x138] sm:$0xff]
  %v479 = vld [vmem:[#allocation4 + $0x140] sm:$0xff]
  %v480 = vld [vmem:[#allocation4 + $0x148] sm:$0xff]
  %v481 = vld [vmem:[#allocation4 + $0x150] sm:$0xff]
  %v482 = vld [vmem:[#allocation4 + $0x158] sm:$0xff]
  %v483 = vld [vmem:[#allocation4 + $0x160] sm:$0xff]
  %v484 = vld [vmem:[#allocation4 + $0x168] sm:$0xff]
  %v485 = vld [vmem:[#allocation4 + $0x170] sm:$0xff]
  %v486 = vld [vmem:[#allocation4 + $0x178] sm:$0xff]
  %v487 = vld [vmem:[#allocation4 + $0x180] sm:$0xff]
  %v488 = vld [vmem:[#allocation4 + $0x188] sm:$0xff]
  %v489 = vld [vmem:[#allocation4 + $0x190] sm:$0xff]
  %v490 = vld [vmem:[#allocation4 + $0x198] sm:$0xff]
  %v491 = vld [vmem:[#allocation4 + $0x1a0] sm:$0xff]
  %v492 = vld [vmem:[#allocation4 + $0x1a8] sm:$0xff]
  %v493 = vld [vmem:[%s1] sm:$0xff]
  %v494 = vld [vmem:[%s4] sm:$0xff]
  %496 = vset.pattern.permute.xlu0 0
  %497 = vperm.xlu0 %496, %v494
  %v498 = vpop.permute.xlu0 %497
  %vm500 = vcmask 588800
  %v502 = vsel %vm500, %v493, 0
  %504 = vmatprep.subr.mxu0 0.0
  %505 = vmatpush1.msra.mxu0 0.0
  %506 = vmatprep.subr.mxu0 0.0
  %507 = vmatpush1.msra.mxu0 0.0
  %508 = vmatprep.subr.mxu0 0.0
  %509 = vmatpush1.msra.mxu0 0.0
  %510 = vmatprep.subr.mxu0 0.0
  %511 = vmatpush1.msra.mxu0 0.0
  %512 = vmatprep.subr.mxu0 0.0
  %513 = vmatpush1.msra.mxu0 0.0
  %514 = vmatprep.subr.mxu0 0.0
  %515 = vmatpush1.msra.mxu0 0.0
  %516 = vmatprep.subr.mxu0 0.0
  %517 = vmatpush1.msra.mxu0 0.0
  %518 = vmatprep.subr.mxu0 %v488
  %519 = vmatpush1.msra.mxu0 %v487
  %520 = vmatprep.subr.mxu0 %v482
  %521 = vmatpush1.msra.mxu0 %v481
  %522 = vmatprep.subr.mxu0 %v476
  %523 = vmatpush1.msra.mxu0 %v475
  %524 = vmatprep.subr.mxu0 %v470
  %525 = vmatpush1.msra.mxu0 %v469
  %526 = vmatprep.subr.mxu0 %v464
  %527 = vmatpush1.msra.mxu0 %v463
  %528 = vmatprep.subr.mxu0 %v458
  %529 = vmatpush1.msra.mxu0 %v457
  %530 = vmatprep.subr.mxu0 %v452
  %531 = vmatpush1.msra.mxu0 %v451
  %532 = vmatprep.subr.mxu0 %v446
  %533 = vmatpush1.msra.mxu0 %v445
  %534 = vmatprep.subr.mxu0 %v440
  %535 = vmatpush1.msra.mxu0 %v439
  %536 = vmatprep.subr.mxu0 0.0
  %537 = vmatpush2.msra.mxu0 0.0
  %538 = vmatprep.subr.mxu0 0.0
  %539 = vmatpush2.msra.mxu0 0.0
  %540 = vmatprep.subr.mxu0 0.0
  %541 = vmatpush2.msra.mxu0 0.0
  %542 = vmatprep.subr.mxu0 0.0
  %543 = vmatpush2.msra.mxu0 0.0
  %544 = vmatprep.subr.mxu0 0.0
  %545 = vmatpush2.msra.mxu0 0.0
  %546 = vmatprep.subr.mxu0 0.0
  %547 = vmatpush2.msra.mxu0 0.0
  %548 = vmatprep.subr.mxu0 0.0
  %549 = vmatpush2.msra.mxu0 0.0
  %550 = vmatprep.subr.mxu0 0.0
  %551 = vmatpush2.msra.mxu0 0.0
  %552 = vmatprep.subr.mxu0 0.0
  %553 = vmatpush2.msra.mxu0 0.0
  %554 = vmatprep.subr.mxu0 0.0
  %555 = vmatpush2.msra.mxu0 0.0
  %556 = vmatprep.subr.mxu0 0.0
  %557 = vmatpush2.msra.mxu0 0.0
  %558 = vmatprep.subr.mxu0 0.0
  %559 = vmatpush2.msra.mxu0 0.0
  %560 = vmatprep.subr.mxu0 0.0
  %561 = vmatpush2.msra.mxu0 0.0
  %562 = vmatprep.subr.mxu0 0.0
  %563 = vmatpush2.msra.mxu0 0.0
  %564 = vmatprep.subr.mxu0 0.0
  %565 = vmatpush2.msra.mxu0 0.0
  %566 = vmatprep.subr.mxu0 0.0
  %567 = vmatpush2.msra.mxu0 0.0
  %568 = vmatprep.mubr.f32.mxu0 0.0
  %569 = vmatmul.mubr.f32.gmra.mxu0 %v502
  %v570 = vpop.f32.mrf.mxu0
  %v571 = vadd.f32 %v498, %v570
  %v572 = vpop.f32.mrf.mxu0
  %v573 = vadd.f32 %v498, %v572
  %574 = vdwg.mxu0
  %575 = vmatprep.subr.mxu0 0.0
  %576 = vmatpush1.msra.mxu0 0.0
  %577 = vmatprep.subr.mxu0 0.0
  %578 = vmatpush1.msra.mxu0 0.0
  %579 = vmatprep.subr.mxu0 0.0
  %580 = vmatpush1.msra.mxu0 0.0
  %581 = vmatprep.subr.mxu0 0.0
  %582 = vmatpush1.msra.mxu0 0.0
  %583 = vmatprep.subr.mxu0 0.0
  %584 = vmatpush1.msra.mxu0 0.0
  %585 = vmatprep.subr.mxu0 0.0
  %586 = vmatpush1.msra.mxu0 0.0
  %587 = vmatprep.subr.mxu0 0.0
  %588 = vmatpush1.msra.mxu0 0.0
  %589 = vmatprep.subr.mxu0 %v490
  %590 = vmatpush1.msra.mxu0 %v489
  %591 = vmatprep.subr.mxu0 %v484
  %592 = vmatpush1.msra.mxu0 %v483
  %593 = vmatprep.subr.mxu0 %v478
  %594 = vmatpush1.msra.mxu0 %v477
  %595 = vmatprep.subr.mxu0 %v472
  %596 = vmatpush1.msra.mxu0 %v471
  %597 = vmatprep.subr.mxu0 %v466
  %598 = vmatpush1.msra.mxu0 %v465
  %599 = vmatprep.subr.mxu0 %v460
  %600 = vmatpush1.msra.mxu0 %v459
  %601 = vmatprep.subr.mxu0 %v454
  %602 = vmatpush1.msra.mxu0 %v453
  %603 = vmatprep.subr.mxu0 %v448
  %604 = vmatpush1.msra.mxu0 %v447
  %605 = vmatprep.subr.mxu0 %v442
  %606 = vmatpush1.msra.mxu0 %v441
  %607 = vmatprep.subr.mxu0 0.0
  %608 = vmatpush2.msra.mxu0 0.0
  %609 = vmatprep.subr.mxu0 0.0
  %610 = vmatpush2.msra.mxu0 0.0
  %611 = vmatprep.subr.mxu0 0.0
  %612 = vmatpush2.msra.mxu0 0.0
  %613 = vmatprep.subr.mxu0 0.0
  %614 = vmatpush2.msra.mxu0 0.0
  %615 = vmatprep.subr.mxu0 0.0
  %616 = vmatpush2.msra.mxu0 0.0
  %617 = vmatprep.subr.mxu0 0.0
  %618 = vmatpush2.msra.mxu0 0.0
  %619 = vmatprep.subr.mxu0 0.0
  %620 = vmatpush2.msra.mxu0 0.0
  %621 = vmatprep.subr.mxu0 0.0
  %622 = vmatpush2.msra.mxu0 0.0
  %623 = vmatprep.subr.mxu0 0.0
  %624 = vmatpush2.msra.mxu0 0.0
  %625 = vmatprep.subr.mxu0 0.0
  %626 = vmatpush2.msra.mxu0 0.0
  %627 = vmatprep.subr.mxu0 0.0
  %628 = vmatpush2.msra.mxu0 0.0
  %629 = vmatprep.subr.mxu0 0.0
  %630 = vmatpush2.msra.mxu0 0.0
  %631 = vmatprep.subr.mxu0 0.0
  %632 = vmatpush2.msra.mxu0 0.0
  %633 = vmatprep.subr.mxu0 0.0
  %634 = vmatpush2.msra.mxu0 0.0
  %635 = vmatprep.subr.mxu0 0.0
  %636 = vmatpush2.msra.mxu0 0.0
  %637 = vmatprep.subr.mxu0 0.0
  %638 = vmatpush2.msra.mxu0 0.0
  %639 = vmatprep.mubr.f32.mxu0 0.0
  %640 = vmatmul.mubr.f32.gmra.mxu0 %v502
  %v641 = vpop.f32.mrf.mxu0
  %v642 = vadd.f32 %v498, %v641
  %v643 = vpop.f32.mrf.mxu0
  %v644 = vadd.f32 %v498, %v643
  %645 = vdwg.mxu0
  %646 = vmatprep.subr.mxu0 0.0
  %647 = vmatpush1.msra.mxu0 0.0
  %648 = vmatprep.subr.mxu0 0.0
  %649 = vmatpush1.msra.mxu0 0.0
  %650 = vmatprep.subr.mxu0 0.0
  %651 = vmatpush1.msra.mxu0 0.0
  %652 = vmatprep.subr.mxu0 0.0
  %653 = vmatpush1.msra.mxu0 0.0
  %654 = vmatprep.subr.mxu0 0.0
  %655 = vmatpush1.msra.mxu0 0.0
  %656 = vmatprep.subr.mxu0 0.0
  %657 = vmatpush1.msra.mxu0 0.0
  %658 = vmatprep.subr.mxu0 0.0
  %659 = vmatpush1.msra.mxu0 0.0
  %660 = vmatprep.subr.mxu0 %v492
  %661 = vmatpush1.msra.mxu0 %v491
  %662 = vmatprep.subr.mxu0 %v486
  %663 = vmatpush1.msra.mxu0 %v485
  %664 = vmatprep.subr.mxu0 %v480
  %665 = vmatpush1.msra.mxu0 %v479
  %666 = vmatprep.subr.mxu0 %v474
  %667 = vmatpush1.msra.mxu0 %v473
  %668 = vmatprep.subr.mxu0 %v468
  %669 = vmatpush1.msra.mxu0 %v467
  %670 = vmatprep.subr.mxu0 %v462
  %671 = vmatpush1.msra.mxu0 %v461
  %672 = vmatprep.subr.mxu0 %v456
  %673 = vmatpush1.msra.mxu0 %v455
  %674 = vmatprep.subr.mxu0 %v450
  %675 = vmatpush1.msra.mxu0 %v449
  %676 = vmatprep.subr.mxu0 %v444
  %677 = vmatpush1.msra.mxu0 %v443
  %678 = vmatprep.subr.mxu0 0.0
  %679 = vmatpush2.msra.mxu0 0.0
  %680 = vmatprep.subr.mxu0 0.0
  %681 = vmatpush2.msra.mxu0 0.0
  %682 = vmatprep.subr.mxu0 0.0
  %683 = vmatpush2.msra.mxu0 0.0
  %684 = vmatprep.subr.mxu0 0.0
  %685 = vmatpush2.msra.mxu0 0.0
  %686 = vmatprep.subr.mxu0 0.0
  %687 = vmatpush2.msra.mxu0 0.0
  %688 = vmatprep.subr.mxu0 0.0
  %689 = vmatpush2.msra.mxu0 0.0
  %690 = vmatprep.subr.mxu0 0.0
  %691 = vmatpush2.msra.mxu0 0.0
  %692 = vmatprep.subr.mxu0 0.0
  %693 = vmatpush2.msra.mxu0 0.0
  %694 = vmatprep.subr.mxu0 0.0
  %695 = vmatpush2.msra.mxu0 0.0
  %696 = vmatprep.subr.mxu0 0.0
  %697 = vmatpush2.msra.mxu0 0.0
  %698 = vmatprep.subr.mxu0 0.0
  %699 = vmatpush2.msra.mxu0 0.0
  %700 = vmatprep.subr.mxu0 0.0
  %701 = vmatpush2.msra.mxu0 0.0
  %702 = vmatprep.subr.mxu0 0.0
  %703 = vmatpush2.msra.mxu0 0.0
  %704 = vmatprep.subr.mxu0 0.0
  %705 = vmatpush2.msra.mxu0 0.0
  %706 = vmatprep.subr.mxu0 0.0
  %707 = vmatpush2.msra.mxu0 0.0
  %708 = vmatprep.subr.mxu0 0.0
  %709 = vmatpush2.msra.mxu0 0.0
  %710 = vmatprep.mubr.f32.mxu0 0.0
  %711 = vmatmul.mubr.f32.gmra.mxu0 %v502
  %v712 = vpop.f32.mrf.mxu0
  %v713 = vadd.f32 %v498, %v712
  %v714 = vpop.f32.mrf.mxu0
  %v715 = vadd.f32 %v498, %v714
  %716 = vdwg.mxu0
  %vm717 = vcmp.ge.f32.partialorder %v571, 0.0
  %vm718 = vcmp.ge.f32.partialorder %v573, 0.0
  %vm719 = vcmp.ge.f32.partialorder %v642, 0.0
  %vm720 = vcmp.ge.f32.partialorder %v644, 0.0
  %vm721 = vcmp.ge.f32.partialorder %v713, 0.0
  %vm722 = vcmp.ge.f32.partialorder %v715, 0.0
  %v723 = vmul.f32 %v571, 0.1
  %v724 = vmul.f32 %v573, 0.1
  %v725 = vmul.f32 %v642, 0.1
  %v726 = vmul.f32 %v644, 0.1
  %v727 = vmul.f32 %v713, 0.1
  %v728 = vmul.f32 %v715, 0.1
  %v729 = vsel %vm717, %v571, %v723
  %v730 = vsel %vm718, %v573, %v724
  %v731 = vsel %vm719, %v642, %v725
  %v732 = vsel %vm720, %v644, %v726
  %v733 = vsel %vm721, %v713, %v727
  %v734 = vsel %vm722, %v715, %v728
  %735 = vst [vmem:[%s9] sm:$0xff] %v729
  %736 = vst [vmem:[%s9 + $0x8] sm:$0xff] %v730
  %737 = vst [vmem:[%s9 + $0x10] sm:$0xff] %v731
  %738 = vst [vmem:[%s9 + $0x18] sm:$0xff] %v732
  %739 = vst [vmem:[%s9 + $0x20] sm:$0xff] %v733
  %740 = vst [vmem:[%s9 + $0x28] sm:$0xff] %v734
  %v741 = vld [vmem:[%s7] sm:$0x3f]
  %v743 = vlaneseq
  %v744 = vshrl.u32 %v743, 7
  %v745 = vsub.s32 0, %v744
  %v746 = vrot.slane %v741, %v745
  %v747 = vlaneseq
  %v748 = vshrl.u32 %v747, 7
  %v749 = vsub.s32 1, %v748
  %v750 = vrot.slane %v741, %v749
  %v751 = vlaneseq
  %v752 = vshrl.u32 %v751, 7
  %v753 = vsub.s32 2, %v752
  %v754 = vrot.slane %v741, %v753
  %v755 = vlaneseq
  %v756 = vshrl.u32 %v755, 7
  %v757 = vsub.s32 3, %v756
  %v758 = vrot.slane %v741, %v757
  %v759 = vlaneseq
  %v760 = vshrl.u32 %v759, 7
  %v761 = vsub.s32 4, %v760
  %v762 = vrot.slane %v741, %v761
  %v763 = vlaneseq
  %v764 = vshrl.u32 %v763, 7
  %v765 = vsub.s32 5, %v764
  %v766 = vrot.slane %v741, %v765
  %v773 = vmul.f32 %v729, %v746
  %v774 = vmul.f32 %v730, %v750
  %v775 = vmul.f32 %v731, %v754
  %v776 = vmul.f32 %v732, %v758
  %v777 = vmul.f32 %v733, %v762
  %v778 = vmul.f32 %v734, %v766
  %779 = vst [vmem:[#allocation2 + $0x8] sm:$0xff] %v773
  %780 = vst [vmem:[#allocation2 + $0x10] sm:$0xff] %v774
  %781 = vst [vmem:[#allocation2 + $0x18] sm:$0xff] %v775
  %782 = vst [vmem:[#allocation2 + $0x20] sm:$0xff] %v776
  %783 = vst [vmem:[#allocation2 + $0x28] sm:$0xff] %v777
  %784 = vst [vmem:[#allocation2 + $0x30] sm:$0xff] %v778
  %v785 = vld [vmem:[#allocation2] sm:$0xff]
  %v786 = vld [vmem:[#allocation2 + $0x8] sm:$0xff]
  %v787 = vld [vmem:[#allocation2 + $0x10] sm:$0xff]
  %v788 = vld [vmem:[#allocation2 + $0x18] sm:$0xff]
  %v789 = vld [vmem:[#allocation2 + $0x20] sm:$0xff]
  %v790 = vld [vmem:[#allocation2 + $0x28] sm:$0xff]
  %v791 = vld [vmem:[#allocation2 + $0x30] sm:$0xff]
  %799 = vrot.lane.b32.xlu0 %v785, 20
  %v800 = vpop.permute.xlu0 %799
  %801 = vrot.lane.b32.xlu0 %v786, 20
  %v802 = vpop.permute.xlu0 %801
  %803 = vrot.lane.b32.xlu0 %v787, 20
  %v804 = vpop.permute.xlu0 %803
  %805 = vrot.lane.b32.xlu0 %v788, 20
  %v806 = vpop.permute.xlu0 %805
  %807 = vrot.lane.b32.xlu0 %v789, 20
  %v808 = vpop.permute.xlu0 %807
  %809 = vrot.lane.b32.xlu0 %v790, 20
  %v810 = vpop.permute.xlu0 %809
  %811 = vrot.lane.b32.xlu0 %v791, 20
  %v812 = vpop.permute.xlu0 %811
  %v813 = vsel %vm79, %v800, %v802
  %v814 = vsel %vm79, %v802, %v804
  %v815 = vsel %vm79, %v804, %v806
  %v816 = vsel %vm79, %v806, %v808
  %v817 = vsel %vm79, %v808, %v810
  %v818 = vsel %vm79, %v810, %v812
  %825 = vst [vmem:[#allocation4] sm:$0xff] %v813
  %826 = vst [vmem:[#allocation4 + $0x8] sm:$0xff] %v814
  %827 = vst [vmem:[#allocation4 + $0x10] sm:$0xff] %v815
  %828 = vst [vmem:[#allocation4 + $0x18] sm:$0xff] %v816
  %829 = vst [vmem:[#allocation4 + $0x20] sm:$0xff] %v817
  %830 = vst [vmem:[#allocation4 + $0x28] sm:$0xff] %v818
  %v831 = vld [vmem:[#allocation2] sm:$0xff]
  %v832 = vld [vmem:[#allocation2 + $0x8] sm:$0xff]
  %v833 = vld [vmem:[#allocation2 + $0x10] sm:$0xff]
  %v834 = vld [vmem:[#allocation2 + $0x18] sm:$0xff]
  %v835 = vld [vmem:[#allocation2 + $0x20] sm:$0xff]
  %v836 = vld [vmem:[#allocation2 + $0x28] sm:$0xff]
  %v837 = vld [vmem:[#allocation2 + $0x30] sm:$0xff]
  %845 = vrot.lane.b32.xlu0 %v831, 19
  %v846 = vpop.permute.xlu0 %845
  %847 = vrot.lane.b32.xlu0 %v832, 19
  %v848 = vpop.permute.xlu0 %847
  %849 = vrot.lane.b32.xlu0 %v833, 19
  %v850 = vpop.permute.xlu0 %849
  %851 = vrot.lane.b32.xlu0 %v834, 19
  %v852 = vpop.permute.xlu0 %851
  %853 = vrot.lane.b32.xlu0 %v835, 19
  %v854 = vpop.permute.xlu0 %853
  %855 = vrot.lane.b32.xlu0 %v836, 19
  %v856 = vpop.permute.xlu0 %855
  %857 = vrot.lane.b32.xlu0 %v837, 19
  %v858 = vpop.permute.xlu0 %857
  %v859 = vsel %vm126, %v846, %v848
  %v860 = vsel %vm126, %v848, %v850
  %v861 = vsel %vm126, %v850, %v852
  %v862 = vsel %vm126, %v852, %v854
  %v863 = vsel %vm126, %v854, %v856
  %v864 = vsel %vm126, %v856, %v858
  %871 = vst [vmem:[#allocation4 + $0x30] sm:$0xff] %v859
  %872 = vst [vmem:[#allocation4 + $0x38] sm:$0xff] %v860
  %873 = vst [vmem:[#allocation4 + $0x40] sm:$0xff] %v861
  %874 = vst [vmem:[#allocation4 + $0x48] sm:$0xff] %v862
  %875 = vst [vmem:[#allocation4 + $0x50] sm:$0xff] %v863
  %876 = vst [vmem:[#allocation4 + $0x58] sm:$0xff] %v864
  %v877 = vld [vmem:[#allocation2] sm:$0xff]
  %v878 = vld [vmem:[#allocation2 + $0x8] sm:$0xff]
  %v879 = vld [vmem:[#allocation2 + $0x10] sm:$0xff]
  %v880 = vld [vmem:[#allocation2 + $0x18] sm:$0xff]
  %v881 = vld [vmem:[#allocation2 + $0x20] sm:$0xff]
  %v882 = vld [vmem:[#allocation2 + $0x28] sm:$0xff]
  %v883 = vld [vmem:[#allocation2 + $0x30] sm:$0xff]
  %891 = vrot.lane.b32.xlu0 %v877, 18
  %v892 = vpop.permute.xlu0 %891
  %893 = vrot.lane.b32.xlu0 %v878, 18
  %v894 = vpop.permute.xlu0 %893
  %895 = vrot.lane.b32.xlu0 %v879, 18
  %v896 = vpop.permute.xlu0 %895
  %897 = vrot.lane.b32.xlu0 %v880, 18
  %v898 = vpop.permute.xlu0 %897
  %899 = vrot.lane.b32.xlu0 %v881, 18
  %v900 = vpop.permute.xlu0 %899
  %901 = vrot.lane.b32.xlu0 %v882, 18
  %v902 = vpop.permute.xlu0 %901
  %903 = vrot.lane.b32.xlu0 %v883, 18
  %v904 = vpop.permute.xlu0 %903
  %v905 = vsel %vm173, %v892, %v894
  %v906 = vsel %vm173, %v894, %v896
  %v907 = vsel %vm173, %v896, %v898
  %v908 = vsel %vm173, %v898, %v900
  %v909 = vsel %vm173, %v900, %v902
  %v910 = vsel %vm173, %v902, %v904
  %917 = vst [vmem:[#allocation4 + $0x60] sm:$0xff] %v905
  %918 = vst [vmem:[#allocation4 + $0x68] sm:$0xff] %v906
  %919 = vst [vmem:[#allocation4 + $0x70] sm:$0xff] %v907
  %920 = vst [vmem:[#allocation4 + $0x78] sm:$0xff] %v908
  %921 = vst [vmem:[#allocation4 + $0x80] sm:$0xff] %v909
  %922 = vst [vmem:[#allocation4 + $0x88] sm:$0xff] %v910
  %v923 = vld [vmem:[#allocation2] sm:$0xff]
  %v924 = vld [vmem:[#allocation2 + $0x8] sm:$0xff]
  %v925 = vld [vmem:[#allocation2 + $0x10] sm:$0xff]
  %v926 = vld [vmem:[#allocation2 + $0x18] sm:$0xff]
  %v927 = vld [vmem:[#allocation2 + $0x20] sm:$0xff]
  %v928 = vld [vmem:[#allocation2 + $0x28] sm:$0xff]
  %v929 = vld [vmem:[#allocation2 + $0x30] sm:$0xff]
  %937 = vrot.lane.b32.xlu0 %v923, 1
  %v938 = vpop.permute.xlu0 %937
  %939 = vrot.lane.b32.xlu0 %v924, 1
  %v940 = vpop.permute.xlu0 %939
  %941 = vrot.lane.b32.xlu0 %v925, 1
  %v942 = vpop.permute.xlu0 %941
  %943 = vrot.lane.b32.xlu0 %v926, 1
  %v944 = vpop.permute.xlu0 %943
  %945 = vrot.lane.b32.xlu0 %v927, 1
  %v946 = vpop.permute.xlu0 %945
  %947 = vrot.lane.b32.xlu0 %v928, 1
  %v948 = vpop.permute.xlu0 %947
  %949 = vrot.lane.b32.xlu0 %v929, 1
  %v950 = vpop.permute.xlu0 %949
  %v951 = vsel %vm220, %v938, %v940
  %v952 = vsel %vm220, %v940, %v942
  %v953 = vsel %vm220, %v942, %v944
  %v954 = vsel %vm220, %v944, %v946
  %v955 = vsel %vm220, %v946, %v948
  %v956 = vsel %vm220, %v948, %v950
  %963 = vst [vmem:[#allocation4 + $0x90] sm:$0xff] %v951
  %964 = vst [vmem:[#allocation4 + $0x98] sm:$0xff] %v952
  %965 = vst [vmem:[#allocation4 + $0xa0] sm:$0xff] %v953
  %966 = vst [vmem:[#allocation4 + $0xa8] sm:$0xff] %v954
  %967 = vst [vmem:[#allocation4 + $0xb0] sm:$0xff] %v955
  %968 = vst [vmem:[#allocation4 + $0xb8] sm:$0xff] %v956
  %v969 = vld [vmem:[#allocation2 + $0x8] sm:$0xff]
  %v970 = vld [vmem:[#allocation2 + $0x10] sm:$0xff]
  %v971 = vld [vmem:[#allocation2 + $0x18] sm:$0xff]
  %v972 = vld [vmem:[#allocation2 + $0x20] sm:$0xff]
  %v973 = vld [vmem:[#allocation2 + $0x28] sm:$0xff]
  %v974 = vld [vmem:[#allocation2 + $0x30] sm:$0xff]
  %975 = vst [vmem:[#allocation4 + $0xc0] sm:$0xff] %v969
  %976 = vst [vmem:[#allocation4 + $0xc8] sm:$0xff] %v970
  %977 = vst [vmem:[#allocation4 + $0xd0] sm:$0xff] %v971
  %978 = vst [vmem:[#allocation4 + $0xd8] sm:$0xff] %v972
  %979 = vst [vmem:[#allocation4 + $0xe0] sm:$0xff] %v973
  %980 = vst [vmem:[#allocation4 + $0xe8] sm:$0xff] %v974
  %v981 = vld [vmem:[#allocation2 + $0x8] sm:$0xff]
  %v982 = vld [vmem:[#allocation2 + $0x10] sm:$0xff]
  %v983 = vld [vmem:[#allocation2 + $0x18] sm:$0xff]
  %v984 = vld [vmem:[#allocation2 + $0x20] sm:$0xff]
  %v985 = vld [vmem:[#allocation2 + $0x28] sm:$0xff]
  %v986 = vld [vmem:[#allocation2 + $0x30] sm:$0xff]
  %v987 = vld [vmem:[#allocation2 + $0x38] sm:$0xff]
  %995 = vrot.lane.b32.xlu0 %v981, 127
  %v996 = vpop.permute.xlu0 %995
  %997 = vrot.lane.b32.xlu0 %v982, 127
  %v998 = vpop.permute.xlu0 %997
  %999 = vrot.lane.b32.xlu0 %v983, 127
  %v1000 = vpop.permute.xlu0 %999
  %1001 = vrot.lane.b32.xlu0 %v984, 127
  %v1002 = vpop.permute.xlu0 %1001
  %1003 = vrot.lane.b32.xlu0 %v985, 127
  %v1004 = vpop.permute.xlu0 %1003
  %1005 = vrot.lane.b32.xlu0 %v986, 127
  %v1006 = vpop.permute.xlu0 %1005
  %1007 = vrot.lane.b32.xlu0 %v987, 127
  %v1008 = vpop.permute.xlu0 %1007
  %v1009 = vsel %vm279, %v996, %v998
  %v1010 = vsel %vm279, %v998, %v1000
  %v1011 = vsel %vm279, %v1000, %v1002
  %v1012 = vsel %vm279, %v1002, %v1004
  %v1013 = vsel %vm279, %v1004, %v1006
  %v1014 = vsel %vm279, %v1006, %v1008
  %1021 = vst [vmem:[#allocation4 + $0xf0] sm:$0xff] %v1009
  %1022 = vst [vmem:[#allocation4 + $0xf8] sm:$0xff] %v1010
  %1023 = vst [vmem:[#allocation4 + $0x100] sm:$0xff] %v1011
  %1024 = vst [vmem:[#allocation4 + $0x108] sm:$0xff] %v1012
  %1025 = vst [vmem:[#allocation4 + $0x110] sm:$0xff] %v1013
  %1026 = vst [vmem:[#allocation4 + $0x118] sm:$0xff] %v1014
  %v1027 = vld [vmem:[#allocation2 + $0x8] sm:$0xff]
  %v1028 = vld [vmem:[#allocation2 + $0x10] sm:$0xff]
  %v1029 = vld [vmem:[#allocation2 + $0x18] sm:$0xff]
  %v1030 = vld [vmem:[#allocation2 + $0x20] sm:$0xff]
  %v1031 = vld [vmem:[#allocation2 + $0x28] sm:$0xff]
  %v1032 = vld [vmem:[#allocation2 + $0x30] sm:$0xff]
  %v1033 = vld [vmem:[#allocation2 + $0x38] sm:$0xff]
  %1041 = vrot.lane.b32.xlu0 %v1027, 110
  %v1042 = vpop.permute.xlu0 %1041
  %1043 = vrot.lane.b32.xlu0 %v1028, 110
  %v1044 = vpop.permute.xlu0 %1043
  %1045 = vrot.lane.b32.xlu0 %v1029, 110
  %v1046 = vpop.permute.xlu0 %1045
  %1047 = vrot.lane.b32.xlu0 %v1030, 110
  %v1048 = vpop.permute.xlu0 %1047
  %1049 = vrot.lane.b32.xlu0 %v1031, 110
  %v1050 = vpop.permute.xlu0 %1049
  %1051 = vrot.lane.b32.xlu0 %v1032, 110
  %v1052 = vpop.permute.xlu0 %1051
  %1053 = vrot.lane.b32.xlu0 %v1033, 110
  %v1054 = vpop.permute.xlu0 %1053
  %v1055 = vsel %vm326, %v1042, %v1044
  %v1056 = vsel %vm326, %v1044, %v1046
  %v1057 = vsel %vm326, %v1046, %v1048
  %v1058 = vsel %vm326, %v1048, %v1050
  %v1059 = vsel %vm326, %v1050, %v1052
  %v1060 = vsel %vm326, %v1052, %v1054
  %1067 = vst [vmem:[#allocation4 + $0x120] sm:$0xff] %v1055
  %1068 = vst [vmem:[#allocation4 + $0x128] sm:$0xff] %v1056
  %1069 = vst [vmem:[#allocation4 + $0x130] sm:$0xff] %v1057
  %1070 = vst [vmem:[#allocation4 + $0x138] sm:$0xff] %v1058
  %1071 = vst [vmem:[#allocation4 + $0x140] sm:$0xff] %v1059
  %1072 = vst [vmem:[#allocation4 + $0x148] sm:$0xff] %v1060
  %v1073 = vld [vmem:[#allocation2 + $0x8] sm:$0xff]
  %v1074 = vld [vmem:[#allocation2 + $0x10] sm:$0xff]
  %v1075 = vld [vmem:[#allocation2 + $0x18] sm:$0xff]
  %v1076 = vld [vmem:[#allocation2 + $0x20] sm:$0xff]
  %v1077 = vld [vmem:[#allocation2 + $0x28] sm:$0xff]
  %v1078 = vld [vmem:[#allocation2 + $0x30] sm:$0xff]
  %v1079 = vld [vmem:[#allocation2 + $0x38] sm:$0xff]
  %1087 = vrot.lane.b32.xlu0 %v1073, 109
  %v1088 = vpop.permute.xlu0 %1087
  %1089 = vrot.lane.b32.xlu0 %v1074, 109
  %v1090 = vpop.permute.xlu0 %1089
  %1091 = vrot.lane.b32.xlu0 %v1075, 109
  %v1092 = vpop.permute.xlu0 %1091
  %1093 = vrot.lane.b32.xlu0 %v1076, 109
  %v1094 = vpop.permute.xlu0 %1093
  %1095 = vrot.lane.b32.xlu0 %v1077, 109
  %v1096 = vpop.permute.xlu0 %1095
  %1097 = vrot.lane.b32.xlu0 %v1078, 109
  %v1098 = vpop.permute.xlu0 %1097
  %1099 = vrot.lane.b32.xlu0 %v1079, 109
  %v1100 = vpop.permute.xlu0 %1099
  %v1101 = vsel %vm373, %v1088, %v1090
  %v1102 = vsel %vm373, %v1090, %v1092
  %v1103 = vsel %vm373, %v1092, %v1094
  %v1104 = vsel %vm373, %v1094, %v1096
  %v1105 = vsel %vm373, %v1096, %v1098
  %v1106 = vsel %vm373, %v1098, %v1100
  %1113 = vst [vmem:[#allocation4 + $0x150] sm:$0xff] %v1101
  %1114 = vst [vmem:[#allocation4 + $0x158] sm:$0xff] %v1102
  %1115 = vst [vmem:[#allocation4 + $0x160] sm:$0xff] %v1103
  %1116 = vst [vmem:[#allocation4 + $0x168] sm:$0xff] %v1104
  %1117 = vst [vmem:[#allocation4 + $0x170] sm:$0xff] %v1105
  %1118 = vst [vmem:[#allocation4 + $0x178] sm:$0xff] %v1106
  %v1119 = vld [vmem:[#allocation2 + $0x8] sm:$0xff]
  %v1120 = vld [vmem:[#allocation2 + $0x10] sm:$0xff]
  %v1121 = vld [vmem:[#allocation2 + $0x18] sm:$0xff]
  %v1122 = vld [vmem:[#allocation2 + $0x20] sm:$0xff]
  %v1123 = vld [vmem:[#allocation2 + $0x28] sm:$0xff]
  %v1124 = vld [vmem:[#allocation2 + $0x30] sm:$0xff]
  %v1125 = vld [vmem:[#allocation2 + $0x38] sm:$0xff]
  %1133 = vrot.lane.b32.xlu0 %v1119, 108
  %v1134 = vpop.permute.xlu0 %1133
  %1135 = vrot.lane.b32.xlu0 %v1120, 108
  %v1136 = vpop.permute.xlu0 %1135
  %1137 = vrot.lane.b32.xlu0 %v1121, 108
  %v1138 = vpop.permute.xlu0 %1137
  %1139 = vrot.lane.b32.xlu0 %v1122, 108
  %v1140 = vpop.permute.xlu0 %1139
  %1141 = vrot.lane.b32.xlu0 %v1123, 108
  %v1142 = vpop.permute.xlu0 %1141
  %1143 = vrot.lane.b32.xlu0 %v1124, 108
  %v1144 = vpop.permute.xlu0 %1143
  %1145 = vrot.lane.b32.xlu0 %v1125, 108
  %v1146 = vpop.permute.xlu0 %1145
  %v1147 = vsel %vm420, %v1134, %v1136
  %v1148 = vsel %vm420, %v1136, %v1138
  %v1149 = vsel %vm420, %v1138, %v1140
  %v1150 = vsel %vm420, %v1140, %v1142
  %v1151 = vsel %vm420, %v1142, %v1144
  %v1152 = vsel %vm420, %v1144, %v1146
  %1159 = vst [vmem:[#allocation4 + $0x180] sm:$0xff] %v1147
  %1160 = vst [vmem:[#allocation4 + $0x188] sm:$0xff] %v1148
  %1161 = vst [vmem:[#allocation4 + $0x190] sm:$0xff] %v1149
  %1162 = vst [vmem:[#allocation4 + $0x198] sm:$0xff] %v1150
  %1163 = vst [vmem:[#allocation4 + $0x1a0] sm:$0xff] %v1151
  %1164 = vst [vmem:[#allocation4 + $0x1a8] sm:$0xff] %v1152
  %v1165 = vld [vmem:[#allocation4] sm:$0xff]
  %v1166 = vld [vmem:[#allocation4 + $0x8] sm:$0xff]
  %v1167 = vld [vmem:[#allocation4 + $0x10] sm:$0xff]
  %v1168 = vld [vmem:[#allocation4 + $0x18] sm:$0xff]
  %v1169 = vld [vmem:[#allocation4 + $0x20] sm:$0xff]
  %v1170 = vld [vmem:[#allocation4 + $0x28] sm:$0xff]
  %v1171 = vld [vmem:[#allocation4 + $0x30] sm:$0xff]
  %v1172 = vld [vmem:[#allocation4 + $0x38] sm:$0xff]
  %v1173 = vld [vmem:[#allocation4 + $0x40] sm:$0xff]
  %v1174 = vld [vmem:[#allocation4 + $0x48] sm:$0xff]
  %v1175 = vld [vmem:[#allocation4 + $0x50] sm:$0xff]
  %v1176 = vld [vmem:[#allocation4 + $0x58] sm:$0xff]
  %v1177 = vld [vmem:[#allocation4 + $0x60] sm:$0xff]
  %v1178 = vld [vmem:[#allocation4 + $0x68] sm:$0xff]
  %v1179 = vld [vmem:[#allocation4 + $0x70] sm:$0xff]
  %v1180 = vld [vmem:[#allocation4 + $0x78] sm:$0xff]
  %v1181 = vld [vmem:[#allocation4 + $0x80] sm:$0xff]
  %v1182 = vld [vmem:[#allocation4 + $0x88] sm:$0xff]
  %v1183 = vld [vmem:[#allocation4 + $0x90] sm:$0xff]
  %v1184 = vld [vmem:[#allocation4 + $0x98] sm:$0xff]
  %v1185 = vld [vmem:[#allocation4 + $0xa0] sm:$0xff]
  %v1186 = vld [vmem:[#allocation4 + $0xa8] sm:$0xff]
  %v1187 = vld [vmem:[#allocation4 + $0xb0] sm:$0xff]
  %v1188 = vld [vmem:[#allocation4 + $0xb8] sm:$0xff]
  %v1189 = vld [vmem:[#allocation4 + $0xc0] sm:$0xff]
  %v1190 = vld [vmem:[#allocation4 + $0xc8] sm:$0xff]
  %v1191 = vld [vmem:[#allocation4 + $0xd0] sm:$0xff]
  %v1192 = vld [vmem:[#allocation4 + $0xd8] sm:$0xff]
  %v1193 = vld [vmem:[#allocation4 + $0xe0] sm:$0xff]
  %v1194 = vld [vmem:[#allocation4 + $0xe8] sm:$0xff]
  %v1195 = vld [vmem:[#allocation4 + $0xf0] sm:$0xff]
  %v1196 = vld [vmem:[#allocation4 + $0xf8] sm:$0xff]
  %v1197 = vld [vmem:[#allocation4 + $0x100] sm:$0xff]
  %v1198 = vld [vmem:[#allocation4 + $0x108] sm:$0xff]
  %v1199 = vld [vmem:[#allocation4 + $0x110] sm:$0xff]
  %v1200 = vld [vmem:[#allocation4 + $0x118] sm:$0xff]
  %v1201 = vld [vmem:[#allocation4 + $0x120] sm:$0xff]
  %v1202 = vld [vmem:[#allocation4 + $0x128] sm:$0xff]
  %v1203 = vld [vmem:[#allocation4 + $0x130] sm:$0xff]
  %v1204 = vld [vmem:[#allocation4 + $0x138] sm:$0xff]
  %v1205 = vld [vmem:[#allocation4 + $0x140] sm:$0xff]
  %v1206 = vld [vmem:[#allocation4 + $0x148] sm:$0xff]
  %v1207 = vld [vmem:[#allocation4 + $0x150] sm:$0xff]
  %v1208 = vld [vmem:[#allocation4 + $0x158] sm:$0xff]
  %v1209 = vld [vmem:[#allocation4 + $0x160] sm:$0xff]
  %v1210 = vld [vmem:[#allocation4 + $0x168] sm:$0xff]
  %v1211 = vld [vmem:[#allocation4 + $0x170] sm:$0xff]
  %v1212 = vld [vmem:[#allocation4 + $0x178] sm:$0xff]
  %v1213 = vld [vmem:[#allocation4 + $0x180] sm:$0xff]
  %v1214 = vld [vmem:[#allocation4 + $0x188] sm:$0xff]
  %v1215 = vld [vmem:[#allocation4 + $0x190] sm:$0xff]
  %v1216 = vld [vmem:[#allocation4 + $0x198] sm:$0xff]
  %v1217 = vld [vmem:[#allocation4 + $0x1a0] sm:$0xff]
  %v1218 = vld [vmem:[#allocation4 + $0x1a8] sm:$0xff]
  %v1219 = vld [vmem:[%s2] sm:$0xff]
  %v1220 = vld [vmem:[%s5] sm:$0xff]
  %1222 = vset.pattern.permute.xlu0 0
  %1223 = vperm.xlu0 %1222, %v1220
  %v1224 = vpop.permute.xlu0 %1223
  %v1227 = vsel %vm500, %v1219, 0
  %1229 = vmatprep.subr.mxu0 0.0
  %1230 = vmatpush1.msra.mxu0 0.0
  %1231 = vmatprep.subr.mxu0 0.0
  %1232 = vmatpush1.msra.mxu0 0.0
  %1233 = vmatprep.subr.mxu0 0.0
  %1234 = vmatpush1.msra.mxu0 0.0
  %1235 = vmatprep.subr.mxu0 0.0
  %1236 = vmatpush1.msra.mxu0 0.0
  %1237 = vmatprep.subr.mxu0 0.0
  %1238 = vmatpush1.msra.mxu0 0.0
  %1239 = vmatprep.subr.mxu0 0.0
  %1240 = vmatpush1.msra.mxu0 0.0
  %1241 = vmatprep.subr.mxu0 0.0
  %1242 = vmatpush1.msra.mxu0 0.0
  %1243 = vmatprep.subr.mxu0 %v1214
  %1244 = vmatpush1.msra.mxu0 %v1213
  %1245 = vmatprep.subr.mxu0 %v1208
  %1246 = vmatpush1.msra.mxu0 %v1207
  %1247 = vmatprep.subr.mxu0 %v1202
  %1248 = vmatpush1.msra.mxu0 %v1201
  %1249 = vmatprep.subr.mxu0 %v1196
  %1250 = vmatpush1.msra.mxu0 %v1195
  %1251 = vmatprep.subr.mxu0 %v1190
  %1252 = vmatpush1.msra.mxu0 %v1189
  %1253 = vmatprep.subr.mxu0 %v1184
  %1254 = vmatpush1.msra.mxu0 %v1183
  %1255 = vmatprep.subr.mxu0 %v1178
  %1256 = vmatpush1.msra.mxu0 %v1177
  %1257 = vmatprep.subr.mxu0 %v1172
  %1258 = vmatpush1.msra.mxu0 %v1171
  %1259 = vmatprep.subr.mxu0 %v1166
  %1260 = vmatpush1.msra.mxu0 %v1165
  %1261 = vmatprep.subr.mxu0 0.0
  %1262 = vmatpush2.msra.mxu0 0.0
  %1263 = vmatprep.subr.mxu0 0.0
  %1264 = vmatpush2.msra.mxu0 0.0
  %1265 = vmatprep.subr.mxu0 0.0
  %1266 = vmatpush2.msra.mxu0 0.0
  %1267 = vmatprep.subr.mxu0 0.0
  %1268 = vmatpush2.msra.mxu0 0.0
  %1269 = vmatprep.subr.mxu0 0.0
  %1270 = vmatpush2.msra.mxu0 0.0
  %1271 = vmatprep.subr.mxu0 0.0
  %1272 = vmatpush2.msra.mxu0 0.0
  %1273 = vmatprep.subr.mxu0 0.0
  %1274 = vmatpush2.msra.mxu0 0.0
  %1275 = vmatprep.subr.mxu0 0.0
  %1276 = vmatpush2.msra.mxu0 0.0
  %1277 = vmatprep.subr.mxu0 0.0
  %1278 = vmatpush2.msra.mxu0 0.0
  %1279 = vmatprep.subr.mxu0 0.0
  %1280 = vmatpush2.msra.mxu0 0.0
  %1281 = vmatprep.subr.mxu0 0.0
  %1282 = vmatpush2.msra.mxu0 0.0
  %1283 = vmatprep.subr.mxu0 0.0
  %1284 = vmatpush2.msra.mxu0 0.0
  %1285 = vmatprep.subr.mxu0 0.0
  %1286 = vmatpush2.msra.mxu0 0.0
  %1287 = vmatprep.subr.mxu0 0.0
  %1288 = vmatpush2.msra.mxu0 0.0
  %1289 = vmatprep.subr.mxu0 0.0
  %1290 = vmatpush2.msra.mxu0 0.0
  %1291 = vmatprep.subr.mxu0 0.0
  %1292 = vmatpush2.msra.mxu0 0.0
  %1293 = vmatprep.mubr.f32.mxu0 0.0
  %1294 = vmatmul.mubr.f32.gmra.mxu0 %v1227
  %v1295 = vpop.f32.mrf.mxu0
  %v1296 = vadd.f32 %v1224, %v1295
  %v1297 = vpop.f32.mrf.mxu0
  %v1298 = vadd.f32 %v1224, %v1297
  %1299 = vdwg.mxu0
  %1300 = vmatprep.subr.mxu0 0.0
  %1301 = vmatpush1.msra.mxu0 0.0
  %1302 = vmatprep.subr.mxu0 0.0
  %1303 = vmatpush1.msra.mxu0 0.0
  %1304 = vmatprep.subr.mxu0 0.0
  %1305 = vmatpush1.msra.mxu0 0.0
  %1306 = vmatprep.subr.mxu0 0.0
  %1307 = vmatpush1.msra.mxu0 0.0
  %1308 = vmatprep.subr.mxu0 0.0
  %1309 = vmatpush1.msra.mxu0 0.0
  %1310 = vmatprep.subr.mxu0 0.0
  %1311 = vmatpush1.msra.mxu0 0.0
  %1312 = vmatprep.subr.mxu0 0.0
  %1313 = vmatpush1.msra.mxu0 0.0
  %1314 = vmatprep.subr.mxu0 %v1216
  %1315 = vmatpush1.msra.mxu0 %v1215
  %1316 = vmatprep.subr.mxu0 %v1210
  %1317 = vmatpush1.msra.mxu0 %v1209
  %1318 = vmatprep.subr.mxu0 %v1204
  %1319 = vmatpush1.msra.mxu0 %v1203
  %1320 = vmatprep.subr.mxu0 %v1198
  %1321 = vmatpush1.msra.mxu0 %v1197
  %1322 = vmatprep.subr.mxu0 %v1192
  %1323 = vmatpush1.msra.mxu0 %v1191
  %1324 = vmatprep.subr.mxu0 %v1186
  %1325 = vmatpush1.msra.mxu0 %v1185
  %1326 = vmatprep.subr.mxu0 %v1180
  %1327 = vmatpush1.msra.mxu0 %v1179
  %1328 = vmatprep.subr.mxu0 %v1174
  %1329 = vmatpush1.msra.mxu0 %v1173
  %1330 = vmatprep.subr.mxu0 %v1168
  %1331 = vmatpush1.msra.mxu0 %v1167
  %1332 = vmatprep.subr.mxu0 0.0
  %1333 = vmatpush2.msra.mxu0 0.0
  %1334 = vmatprep.subr.mxu0 0.0
  %1335 = vmatpush2.msra.mxu0 0.0
  %1336 = vmatprep.subr.mxu0 0.0
  %1337 = vmatpush2.msra.mxu0 0.0
  %1338 = vmatprep.subr.mxu0 0.0
  %1339 = vmatpush2.msra.mxu0 0.0
  %1340 = vmatprep.subr.mxu0 0.0
  %1341 = vmatpush2.msra.mxu0 0.0
  %1342 = vmatprep.subr.mxu0 0.0
  %1343 = vmatpush2.msra.mxu0 0.0
  %1344 = vmatprep.subr.mxu0 0.0
  %1345 = vmatpush2.msra.mxu0 0.0
  %1346 = vmatprep.subr.mxu0 0.0
  %1347 = vmatpush2.msra.mxu0 0.0
  %1348 = vmatprep.subr.mxu0 0.0
  %1349 = vmatpush2.msra.mxu0 0.0
  %1350 = vmatprep.subr.mxu0 0.0
  %1351 = vmatpush2.msra.mxu0 0.0
  %1352 = vmatprep.subr.mxu0 0.0
  %1353 = vmatpush2.msra.mxu0 0.0
  %1354 = vmatprep.subr.mxu0 0.0
  %1355 = vmatpush2.msra.mxu0 0.0
  %1356 = vmatprep.subr.mxu0 0.0
  %1357 = vmatpush2.msra.mxu0 0.0
  %1358 = vmatprep.subr.mxu0 0.0
  %1359 = vmatpush2.msra.mxu0 0.0
  %1360 = vmatprep.subr.mxu0 0.0
  %1361 = vmatpush2.msra.mxu0 0.0
  %1362 = vmatprep.subr.mxu0 0.0
  %1363 = vmatpush2.msra.mxu0 0.0
  %1364 = vmatprep.mubr.f32.mxu0 0.0
  %1365 = vmatmul.mubr.f32.gmra.mxu0 %v1227
  %v1366 = vpop.f32.mrf.mxu0
  %v1367 = vadd.f32 %v1224, %v1366
  %v1368 = vpop.f32.mrf.mxu0
  %v1369 = vadd.f32 %v1224, %v1368
  %1370 = vdwg.mxu0
  %1371 = vmatprep.subr.mxu0 0.0
  %1372 = vmatpush1.msra.mxu0 0.0
  %1373 = vmatprep.subr.mxu0 0.0
  %1374 = vmatpush1.msra.mxu0 0.0
  %1375 = vmatprep.subr.mxu0 0.0
  %1376 = vmatpush1.msra.mxu0 0.0
  %1377 = vmatprep.subr.mxu0 0.0
  %1378 = vmatpush1.msra.mxu0 0.0
  %1379 = vmatprep.subr.mxu0 0.0
  %1380 = vmatpush1.msra.mxu0 0.0
  %1381 = vmatprep.subr.mxu0 0.0
  %1382 = vmatpush1.msra.mxu0 0.0
  %1383 = vmatprep.subr.mxu0 0.0
  %1384 = vmatpush1.msra.mxu0 0.0
  %1385 = vmatprep.subr.mxu0 %v1218
  %1386 = vmatpush1.msra.mxu0 %v1217
  %1387 = vmatprep.subr.mxu0 %v1212
  %1388 = vmatpush1.msra.mxu0 %v1211
  %1389 = vmatprep.subr.mxu0 %v1206
  %1390 = vmatpush1.msra.mxu0 %v1205
  %1391 = vmatprep.subr.mxu0 %v1200
  %1392 = vmatpush1.msra.mxu0 %v1199
  %1393 = vmatprep.subr.mxu0 %v1194
  %1394 = vmatpush1.msra.mxu0 %v1193
  %1395 = vmatprep.subr.mxu0 %v1188
  %1396 = vmatpush1.msra.mxu0 %v1187
  %1397 = vmatprep.subr.mxu0 %v1182
  %1398 = vmatpush1.msra.mxu0 %v1181
  %1399 = vmatprep.subr.mxu0 %v1176
  %1400 = vmatpush1.msra.mxu0 %v1175
  %1401 = vmatprep.subr.mxu0 %v1170
  %1402 = vmatpush1.msra.mxu0 %v1169
  %1403 = vmatprep.subr.mxu0 0.0
  %1404 = vmatpush2.msra.mxu0 0.0
  %1405 = vmatprep.subr.mxu0 0.0
  %1406 = vmatpush2.msra.mxu0 0.0
  %1407 = vmatprep.subr.mxu0 0.0
  %1408 = vmatpush2.msra.mxu0 0.0
  %1409 = vmatprep.subr.mxu0 0.0
  %1410 = vmatpush2.msra.mxu0 0.0
  %1411 = vmatprep.subr.mxu0 0.0
  %1412 = vmatpush2.msra.mxu0 0.0
  %1413 = vmatprep.subr.mxu0 0.0
  %1414 = vmatpush2.msra.mxu0 0.0
  %1415 = vmatprep.subr.mxu0 0.0
  %1416 = vmatpush2.msra.mxu0 0.0
  %1417 = vmatprep.subr.mxu0 0.0
  %1418 = vmatpush2.msra.mxu0 0.0
  %1419 = vmatprep.subr.mxu0 0.0
  %1420 = vmatpush2.msra.mxu0 0.0
  %1421 = vmatprep.subr.mxu0 0.0
  %1422 = vmatpush2.msra.mxu0 0.0
  %1423 = vmatprep.subr.mxu0 0.0
  %1424 = vmatpush2.msra.mxu0 0.0
  %1425 = vmatprep.subr.mxu0 0.0
  %1426 = vmatpush2.msra.mxu0 0.0
  %1427 = vmatprep.subr.mxu0 0.0
  %1428 = vmatpush2.msra.mxu0 0.0
  %1429 = vmatprep.subr.mxu0 0.0
  %1430 = vmatpush2.msra.mxu0 0.0
  %1431 = vmatprep.subr.mxu0 0.0
  %1432 = vmatpush2.msra.mxu0 0.0
  %1433 = vmatprep.subr.mxu0 0.0
  %1434 = vmatpush2.msra.mxu0 0.0
  %1435 = vmatprep.mubr.f32.mxu0 0.0
  %1436 = vmatmul.mubr.f32.gmra.mxu0 %v1227
  %v1437 = vpop.f32.mrf.mxu0
  %v1438 = vadd.f32 %v1224, %v1437
  %v1439 = vpop.f32.mrf.mxu0
  %v1440 = vadd.f32 %v1224, %v1439
  %1441 = vdwg.mxu0
  %vm1442 = vcmp.ge.f32.partialorder %v1296, 0.0
  %vm1443 = vcmp.ge.f32.partialorder %v1298, 0.0
  %vm1444 = vcmp.ge.f32.partialorder %v1367, 0.0
  %vm1445 = vcmp.ge.f32.partialorder %v1369, 0.0
  %vm1446 = vcmp.ge.f32.partialorder %v1438, 0.0
  %vm1447 = vcmp.ge.f32.partialorder %v1440, 0.0
  %v1448 = vmul.f32 %v1296, 0.1
  %v1449 = vmul.f32 %v1298, 0.1
  %v1450 = vmul.f32 %v1367, 0.1
  %v1451 = vmul.f32 %v1369, 0.1
  %v1452 = vmul.f32 %v1438, 0.1
  %v1453 = vmul.f32 %v1440, 0.1
  %v1454 = vsel %vm1442, %v1296, %v1448
  %v1455 = vsel %vm1443, %v1298, %v1449
  %v1456 = vsel %vm1444, %v1367, %v1450
  %v1457 = vsel %vm1445, %v1369, %v1451
  %v1458 = vsel %vm1446, %v1438, %v1452
  %v1459 = vsel %vm1447, %v1440, %v1453
  %1460 = vst [vmem:[%s10] sm:$0xff] %v1454
  %1461 = vst [vmem:[%s10 + $0x8] sm:$0xff] %v1455
  %1462 = vst [vmem:[%s10 + $0x10] sm:$0xff] %v1456
  %1463 = vst [vmem:[%s10 + $0x18] sm:$0xff] %v1457
  %1464 = vst [vmem:[%s10 + $0x20] sm:$0xff] %v1458
  %1465 = vst [vmem:[%s10 + $0x28] sm:$0xff] %v1459
  %v1466 = vld [vmem:[%s8] sm:$0x3f]
  %v1468 = vlaneseq
  %v1469 = vshrl.u32 %v1468, 7
  %v1470 = vsub.s32 0, %v1469
  %v1471 = vrot.slane %v1466, %v1470
  %v1472 = vlaneseq
  %v1473 = vshrl.u32 %v1472, 7
  %v1474 = vsub.s32 1, %v1473
  %v1475 = vrot.slane %v1466, %v1474
  %v1476 = vlaneseq
  %v1477 = vshrl.u32 %v1476, 7
  %v1478 = vsub.s32 2, %v1477
  %v1479 = vrot.slane %v1466, %v1478
  %v1480 = vlaneseq
  %v1481 = vshrl.u32 %v1480, 7
  %v1482 = vsub.s32 3, %v1481
  %v1483 = vrot.slane %v1466, %v1482
  %v1484 = vlaneseq
  %v1485 = vshrl.u32 %v1484, 7
  %v1486 = vsub.s32 4, %v1485
  %v1487 = vrot.slane %v1466, %v1486
  %v1488 = vlaneseq
  %v1489 = vshrl.u32 %v1488, 7
  %v1490 = vsub.s32 5, %v1489
  %v1491 = vrot.slane %v1466, %v1490
  %v1498 = vmul.f32 %v1454, %v1471
  %v1499 = vmul.f32 %v1455, %v1475
  %v1500 = vmul.f32 %v1456, %v1479
  %v1501 = vmul.f32 %v1457, %v1483
  %v1502 = vmul.f32 %v1458, %v1487
  %v1503 = vmul.f32 %v1459, %v1491
  %1504 = vst [vmem:[#allocation3 + $0x8] sm:$0xff] %v1498
  %1505 = vst [vmem:[#allocation3 + $0x10] sm:$0xff] %v1499
  %1506 = vst [vmem:[#allocation3 + $0x18] sm:$0xff] %v1500
  %1507 = vst [vmem:[#allocation3 + $0x20] sm:$0xff] %v1501
  %1508 = vst [vmem:[#allocation3 + $0x28] sm:$0xff] %v1502
  %1509 = vst [vmem:[#allocation3 + $0x30] sm:$0xff] %v1503
  %v1510 = vld [vmem:[#allocation3] sm:$0xff]
  %v1511 = vld [vmem:[#allocation3 + $0x8] sm:$0xff]
  %v1512 = vld [vmem:[#allocation3 + $0x10] sm:$0xff]
  %v1513 = vld [vmem:[#allocation3 + $0x18] sm:$0xff]
  %v1514 = vld [vmem:[#allocation3 + $0x20] sm:$0xff]
  %v1515 = vld [vmem:[#allocation3 + $0x28] sm:$0xff]
  %v1516 = vld [vmem:[#allocation3 + $0x30] sm:$0xff]
  %1524 = vrot.lane.b32.xlu0 %v1510, 40
  %v1525 = vpop.permute.xlu0 %1524
  %1526 = vrot.lane.b32.xlu0 %v1511, 40
  %v1527 = vpop.permute.xlu0 %1526
  %1528 = vrot.lane.b32.xlu0 %v1512, 40
  %v1529 = vpop.permute.xlu0 %1528
  %1530 = vrot.lane.b32.xlu0 %v1513, 40
  %v1531 = vpop.permute.xlu0 %1530
  %1532 = vrot.lane.b32.xlu0 %v1514, 40
  %v1533 = vpop.permute.xlu0 %1532
  %1534 = vrot.lane.b32.xlu0 %v1515, 40
  %v1535 = vpop.permute.xlu0 %1534
  %1536 = vrot.lane.b32.xlu0 %v1516, 40
  %v1537 = vpop.permute.xlu0 %1536
  %vm1538 = vcmask 326656
  %v1539 = vsel %vm1538, %v1525, %v1527
  %v1540 = vsel %vm1538, %v1527, %v1529
  %v1541 = vsel %vm1538, %v1529, %v1531
  %v1542 = vsel %vm1538, %v1531, %v1533
  %v1543 = vsel %vm1538, %v1533, %v1535
  %v1544 = vsel %vm1538, %v1535, %v1537
  %1551 = vst [vmem:[#allocation4] sm:$0xff] %v1539
  %1552 = vst [vmem:[#allocation4 + $0x8] sm:$0xff] %v1540
  %1553 = vst [vmem:[#allocation4 + $0x10] sm:$0xff] %v1541
  %1554 = vst [vmem:[#allocation4 + $0x18] sm:$0xff] %v1542
  %1555 = vst [vmem:[#allocation4 + $0x20] sm:$0xff] %v1543
  %1556 = vst [vmem:[#allocation4 + $0x28] sm:$0xff] %v1544
  %v1557 = vld [vmem:[#allocation3] sm:$0xff]
  %v1558 = vld [vmem:[#allocation3 + $0x8] sm:$0xff]
  %v1559 = vld [vmem:[#allocation3 + $0x10] sm:$0xff]
  %v1560 = vld [vmem:[#allocation3 + $0x18] sm:$0xff]
  %v1561 = vld [vmem:[#allocation3 + $0x20] sm:$0xff]
  %v1562 = vld [vmem:[#allocation3 + $0x28] sm:$0xff]
  %v1563 = vld [vmem:[#allocation3 + $0x30] sm:$0xff]
  %1571 = vrot.lane.b32.xlu0 %v1557, 38
  %v1572 = vpop.permute.xlu0 %1571
  %1573 = vrot.lane.b32.xlu0 %v1558, 38
  %v1574 = vpop.permute.xlu0 %1573
  %1575 = vrot.lane.b32.xlu0 %v1559, 38
  %v1576 = vpop.permute.xlu0 %1575
  %1577 = vrot.lane.b32.xlu0 %v1560, 38
  %v1578 = vpop.permute.xlu0 %1577
  %1579 = vrot.lane.b32.xlu0 %v1561, 38
  %v1580 = vpop.permute.xlu0 %1579
  %1581 = vrot.lane.b32.xlu0 %v1562, 38
  %v1582 = vpop.permute.xlu0 %1581
  %1583 = vrot.lane.b32.xlu0 %v1563, 38
  %v1584 = vpop.permute.xlu0 %1583
  %vm1585 = vcmask 310272
  %v1586 = vsel %vm1585, %v1572, %v1574
  %v1587 = vsel %vm1585, %v1574, %v1576
  %v1588 = vsel %vm1585, %v1576, %v1578
  %v1589 = vsel %vm1585, %v1578, %v1580
  %v1590 = vsel %vm1585, %v1580, %v1582
  %v1591 = vsel %vm1585, %v1582, %v1584
  %1598 = vst [vmem:[#allocation4 + $0x30] sm:$0xff] %v1586
  %1599 = vst [vmem:[#allocation4 + $0x38] sm:$0xff] %v1587
  %1600 = vst [vmem:[#allocation4 + $0x40] sm:$0xff] %v1588
  %1601 = vst [vmem:[#allocation4 + $0x48] sm:$0xff] %v1589
  %1602 = vst [vmem:[#allocation4 + $0x50] sm:$0xff] %v1590
  %1603 = vst [vmem:[#allocation4 + $0x58] sm:$0xff] %v1591
  %v1604 = vld [vmem:[#allocation3] sm:$0xff]
  %v1605 = vld [vmem:[#allocation3 + $0x8] sm:$0xff]
  %v1606 = vld [vmem:[#allocation3 + $0x10] sm:$0xff]
  %v1607 = vld [vmem:[#allocation3 + $0x18] sm:$0xff]
  %v1608 = vld [vmem:[#allocation3 + $0x20] sm:$0xff]
  %v1609 = vld [vmem:[#allocation3 + $0x28] sm:$0xff]
  %v1610 = vld [vmem:[#allocation3 + $0x30] sm:$0xff]
  %1618 = vrot.lane.b32.xlu0 %v1604, 36
  %v1619 = vpop.permute.xlu0 %1618
  %1620 = vrot.lane.b32.xlu0 %v1605, 36
  %v1621 = vpop.permute.xlu0 %1620
  %1622 = vrot.lane.b32.xlu0 %v1606, 36
  %v1623 = vpop.permute.xlu0 %1622
  %1624 = vrot.lane.b32.xlu0 %v1607, 36
  %v1625 = vpop.permute.xlu0 %1624
  %1626 = vrot.lane.b32.xlu0 %v1608, 36
  %v1627 = vpop.permute.xlu0 %1626
  %1628 = vrot.lane.b32.xlu0 %v1609, 36
  %v1629 = vpop.permute.xlu0 %1628
  %1630 = vrot.lane.b32.xlu0 %v1610, 36
  %v1631 = vpop.permute.xlu0 %1630
  %vm1632 = vcmask 293888
  %v1633 = vsel %vm1632, %v1619, %v1621
  %v1634 = vsel %vm1632, %v1621, %v1623
  %v1635 = vsel %vm1632, %v1623, %v1625
  %v1636 = vsel %vm1632, %v1625, %v1627
  %v1637 = vsel %vm1632, %v1627, %v1629
  %v1638 = vsel %vm1632, %v1629, %v1631
  %1645 = vst [vmem:[#allocation4 + $0x60] sm:$0xff] %v1633
  %1646 = vst [vmem:[#allocation4 + $0x68] sm:$0xff] %v1634
  %1647 = vst [vmem:[#allocation4 + $0x70] sm:$0xff] %v1635
  %1648 = vst [vmem:[#allocation4 + $0x78] sm:$0xff] %v1636
  %1649 = vst [vmem:[#allocation4 + $0x80] sm:$0xff] %v1637
  %1650 = vst [vmem:[#allocation4 + $0x88] sm:$0xff] %v1638
  %v1651 = vld [vmem:[#allocation3] sm:$0xff]
  %v1652 = vld [vmem:[#allocation3 + $0x8] sm:$0xff]
  %v1653 = vld [vmem:[#allocation3 + $0x10] sm:$0xff]
  %v1654 = vld [vmem:[#allocation3 + $0x18] sm:$0xff]
  %v1655 = vld [vmem:[#allocation3 + $0x20] sm:$0xff]
  %v1656 = vld [vmem:[#allocation3 + $0x28] sm:$0xff]
  %v1657 = vld [vmem:[#allocation3 + $0x30] sm:$0xff]
  %1665 = vrot.lane.b32.xlu0 %v1651, 2
  %v1666 = vpop.permute.xlu0 %1665
  %1667 = vrot.lane.b32.xlu0 %v1652, 2
  %v1668 = vpop.permute.xlu0 %1667
  %1669 = vrot.lane.b32.xlu0 %v1653, 2
  %v1670 = vpop.permute.xlu0 %1669
  %1671 = vrot.lane.b32.xlu0 %v1654, 2
  %v1672 = vpop.permute.xlu0 %1671
  %1673 = vrot.lane.b32.xlu0 %v1655, 2
  %v1674 = vpop.permute.xlu0 %1673
  %1675 = vrot.lane.b32.xlu0 %v1656, 2
  %v1676 = vpop.permute.xlu0 %1675
  %1677 = vrot.lane.b32.xlu0 %v1657, 2
  %v1678 = vpop.permute.xlu0 %1677
  %vm1679 = vcmask 15360
  %v1680 = vsel %vm1679, %v1666, %v1668
  %v1681 = vsel %vm1679, %v1668, %v1670
  %v1682 = vsel %vm1679, %v1670, %v1672
  %v1683 = vsel %vm1679, %v1672, %v1674
  %v1684 = vsel %vm1679, %v1674, %v1676
  %v1685 = vsel %vm1679, %v1676, %v1678
  %1692 = vst [vmem:[#allocation4 + $0x90] sm:$0xff] %v1680
  %1693 = vst [vmem:[#allocation4 + $0x98] sm:$0xff] %v1681
  %1694 = vst [vmem:[#allocation4 + $0xa0] sm:$0xff] %v1682
  %1695 = vst [vmem:[#allocation4 + $0xa8] sm:$0xff] %v1683
  %1696 = vst [vmem:[#allocation4 + $0xb0] sm:$0xff] %v1684
  %1697 = vst [vmem:[#allocation4 + $0xb8] sm:$0xff] %v1685
  %v1698 = vld [vmem:[#allocation3 + $0x8] sm:$0xff]
  %v1699 = vld [vmem:[#allocation3 + $0x10] sm:$0xff]
  %v1700 = vld [vmem:[#allocation3 + $0x18] sm:$0xff]
  %v1701 = vld [vmem:[#allocation3 + $0x20] sm:$0xff]
  %v1702 = vld [vmem:[#allocation3 + $0x28] sm:$0xff]
  %v1703 = vld [vmem:[#allocation3 + $0x30] sm:$0xff]
  %1704 = vst [vmem:[#allocation4 + $0xc0] sm:$0xff] %v1698
  %1705 = vst [vmem:[#allocation4 + $0xc8] sm:$0xff] %v1699
  %1706 = vst [vmem:[#allocation4 + $0xd0] sm:$0xff] %v1700
  %1707 = vst [vmem:[#allocation4 + $0xd8] sm:$0xff] %v1701
  %1708 = vst [vmem:[#allocation4 + $0xe0] sm:$0xff] %v1702
  %1709 = vst [vmem:[#allocation4 + $0xe8] sm:$0xff] %v1703
  %v1710 = vld [vmem:[#allocation3 + $0x8] sm:$0xff]
  %v1711 = vld [vmem:[#allocation3 + $0x10] sm:$0xff]
  %v1712 = vld [vmem:[#allocation3 + $0x18] sm:$0xff]
  %v1713 = vld [vmem:[#allocation3 + $0x20] sm:$0xff]
  %v1714 = vld [vmem:[#allocation3 + $0x28] sm:$0xff]
  %v1715 = vld [vmem:[#allocation3 + $0x30] sm:$0xff]
  %v1716 = vld [vmem:[#allocation3 + $0x38] sm:$0xff]
  %1724 = vrot.lane.b32.xlu0 %v1710, 126
  %v1725 = vpop.permute.xlu0 %1724
  %1726 = vrot.lane.b32.xlu0 %v1711, 126
  %v1727 = vpop.permute.xlu0 %1726
  %1728 = vrot.lane.b32.xlu0 %v1712, 126
  %v1729 = vpop.permute.xlu0 %1728
  %1730 = vrot.lane.b32.xlu0 %v1713, 126
  %v1731 = vpop.permute.xlu0 %1730
  %1732 = vrot.lane.b32.xlu0 %v1714, 126
  %v1733 = vpop.permute.xlu0 %1732
  %1734 = vrot.lane.b32.xlu0 %v1715, 126
  %v1735 = vpop.permute.xlu0 %1734
  %1736 = vrot.lane.b32.xlu0 %v1716, 126
  %v1737 = vpop.permute.xlu0 %1736
  %vm1738 = vcmask 1031168
  %v1739 = vsel %vm1738, %v1725, %v1727
  %v1740 = vsel %vm1738, %v1727, %v1729
  %v1741 = vsel %vm1738, %v1729, %v1731
  %v1742 = vsel %vm1738, %v1731, %v1733
  %v1743 = vsel %vm1738, %v1733, %v1735
  %v1744 = vsel %vm1738, %v1735, %v1737
  %1751 = vst [vmem:[#allocation4 + $0xf0] sm:$0xff] %v1739
  %1752 = vst [vmem:[#allocation4 + $0xf8] sm:$0xff] %v1740
  %1753 = vst [vmem:[#allocation4 + $0x100] sm:$0xff] %v1741
  %1754 = vst [vmem:[#allocation4 + $0x108] sm:$0xff] %v1742
  %1755 = vst [vmem:[#allocation4 + $0x110] sm:$0xff] %v1743
  %1756 = vst [vmem:[#allocation4 + $0x118] sm:$0xff] %v1744
  %v1757 = vld [vmem:[#allocation3 + $0x8] sm:$0xff]
  %v1758 = vld [vmem:[#allocation3 + $0x10] sm:$0xff]
  %v1759 = vld [vmem:[#allocation3 + $0x18] sm:$0xff]
  %v1760 = vld [vmem:[#allocation3 + $0x20] sm:$0xff]
  %v1761 = vld [vmem:[#allocation3 + $0x28] sm:$0xff]
  %v1762 = vld [vmem:[#allocation3 + $0x30] sm:$0xff]
  %v1763 = vld [vmem:[#allocation3 + $0x38] sm:$0xff]
  %1771 = vrot.lane.b32.xlu0 %v1757, 92
  %v1772 = vpop.permute.xlu0 %1771
  %1773 = vrot.lane.b32.xlu0 %v1758, 92
  %v1774 = vpop.permute.xlu0 %1773
  %1775 = vrot.lane.b32.xlu0 %v1759, 92
  %v1776 = vpop.permute.xlu0 %1775
  %1777 = vrot.lane.b32.xlu0 %v1760, 92
  %v1778 = vpop.permute.xlu0 %1777
  %1779 = vrot.lane.b32.xlu0 %v1761, 92
  %v1780 = vpop.permute.xlu0 %1779
  %1781 = vrot.lane.b32.xlu0 %v1762, 92
  %v1782 = vpop.permute.xlu0 %1781
  %1783 = vrot.lane.b32.xlu0 %v1763, 92
  %v1784 = vpop.permute.xlu0 %1783
  %vm1785 = vcmask 752640
  %v1786 = vsel %vm1785, %v1772, %v1774
  %v1787 = vsel %vm1785, %v1774, %v1776
  %v1788 = vsel %vm1785, %v1776, %v1778
  %v1789 = vsel %vm1785, %v1778, %v1780
  %v1790 = vsel %vm1785, %v1780, %v1782
  %v1791 = vsel %vm1785, %v1782, %v1784
  %1798 = vst [vmem:[#allocation4 + $0x120] sm:$0xff] %v1786
  %1799 = vst [vmem:[#allocation4 + $0x128] sm:$0xff] %v1787
  %1800 = vst [vmem:[#allocation4 + $0x130] sm:$0xff] %v1788
  %1801 = vst [vmem:[#allocation4 + $0x138] sm:$0xff] %v1789
  %1802 = vst [vmem:[#allocation4 + $0x140] sm:$0xff] %v1790
  %1803 = vst [vmem:[#allocation4 + $0x148] sm:$0xff] %v1791
  %v1804 = vld [vmem:[#allocation3 + $0x8] sm:$0xff]
  %v1805 = vld [vmem:[#allocation3 + $0x10] sm:$0xff]
  %v1806 = vld [vmem:[#allocation3 + $0x18] sm:$0xff]
  %v1807 = vld [vmem:[#allocation3 + $0x20] sm:$0xff]
  %v1808 = vld [vmem:[#allocation3 + $0x28] sm:$0xff]
  %v1809 = vld [vmem:[#allocation3 + $0x30] sm:$0xff]
  %v1810 = vld [vmem:[#allocation3 + $0x38] sm:$0xff]
  %1818 = vrot.lane.b32.xlu0 %v1804, 90
  %v1819 = vpop.permute.xlu0 %1818
  %1820 = vrot.lane.b32.xlu0 %v1805, 90
  %v1821 = vpop.permute.xlu0 %1820
  %1822 = vrot.lane.b32.xlu0 %v1806, 90
  %v1823 = vpop.permute.xlu0 %1822
  %1824 = vrot.lane.b32.xlu0 %v1807, 90
  %v1825 = vpop.permute.xlu0 %1824
  %1826 = vrot.lane.b32.xlu0 %v1808, 90
  %v1827 = vpop.permute.xlu0 %1826
  %1828 = vrot.lane.b32.xlu0 %v1809, 90
  %v1829 = vpop.permute.xlu0 %1828
  %1830 = vrot.lane.b32.xlu0 %v1810, 90
  %v1831 = vpop.permute.xlu0 %1830
  %vm1832 = vcmask 736256
  %v1833 = vsel %vm1832, %v1819, %v1821
  %v1834 = vsel %vm1832, %v1821, %v1823
  %v1835 = vsel %vm1832, %v1823, %v1825
  %v1836 = vsel %vm1832, %v1825, %v1827
  %v1837 = vsel %vm1832, %v1827, %v1829
  %v1838 = vsel %vm1832, %v1829, %v1831
  %1845 = vst [vmem:[#allocation4 + $0x150] sm:$0xff] %v1833
  %1846 = vst [vmem:[#allocation4 + $0x158] sm:$0xff] %v1834
  %1847 = vst [vmem:[#allocation4 + $0x160] sm:$0xff] %v1835
  %1848 = vst [vmem:[#allocation4 + $0x168] sm:$0xff] %v1836
  %1849 = vst [vmem:[#allocation4 + $0x170] sm:$0xff] %v1837
  %1850 = vst [vmem:[#allocation4 + $0x178] sm:$0xff] %v1838
  %v1851 = vld [vmem:[#allocation3 + $0x8] sm:$0xff]
  %v1852 = vld [vmem:[#allocation3 + $0x10] sm:$0xff]
  %v1853 = vld [vmem:[#allocation3 + $0x18] sm:$0xff]
  %v1854 = vld [vmem:[#allocation3 + $0x20] sm:$0xff]
  %v1855 = vld [vmem:[#allocation3 + $0x28] sm:$0xff]
  %v1856 = vld [vmem:[#allocation3 + $0x30] sm:$0xff]
  %v1857 = vld [vmem:[#allocation3 + $0x38] sm:$0xff]
  %1865 = vrot.lane.b32.xlu0 %v1851, 88
  %v1866 = vpop.permute.xlu0 %1865
  %1867 = vrot.lane.b32.xlu0 %v1852, 88
  %v1868 = vpop.permute.xlu0 %1867
  %1869 = vrot.lane.b32.xlu0 %v1853, 88
  %v1870 = vpop.permute.xlu0 %1869
  %1871 = vrot.lane.b32.xlu0 %v1854, 88
  %v1872 = vpop.permute.xlu0 %1871
  %1873 = vrot.lane.b32.xlu0 %v1855, 88
  %v1874 = vpop.permute.xlu0 %1873
  %1875 = vrot.lane.b32.xlu0 %v1856, 88
  %v1876 = vpop.permute.xlu0 %1875
  %1877 = vrot.lane.b32.xlu0 %v1857, 88
  %v1878 = vpop.permute.xlu0 %1877
  %vm1879 = vcmask 719872
  %v1880 = vsel %vm1879, %v1866, %v1868
  %v1881 = vsel %vm1879, %v1868, %v1870
  %v1882 = vsel %vm1879, %v1870, %v1872
  %v1883 = vsel %vm1879, %v1872, %v1874
  %v1884 = vsel %vm1879, %v1874, %v1876
  %v1885 = vsel %vm1879, %v1876, %v1878
  %1892 = vst [vmem:[#allocation4 + $0x180] sm:$0xff] %v1880
  %1893 = vst [vmem:[#allocation4 + $0x188] sm:$0xff] %v1881
  %1894 = vst [vmem:[#allocation4 + $0x190] sm:$0xff] %v1882
  %1895 = vst [vmem:[#allocation4 + $0x198] sm:$0xff] %v1883
  %1896 = vst [vmem:[#allocation4 + $0x1a0] sm:$0xff] %v1884
  %1897 = vst [vmem:[#allocation4 + $0x1a8] sm:$0xff] %v1885
  %v1898 = vld [vmem:[#allocation4] sm:$0xff]
  %v1899 = vld [vmem:[#allocation4 + $0x8] sm:$0xff]
  %v1900 = vld [vmem:[#allocation4 + $0x10] sm:$0xff]
  %v1901 = vld [vmem:[#allocation4 + $0x18] sm:$0xff]
  %v1902 = vld [vmem:[#allocation4 + $0x20] sm:$0xff]
  %v1903 = vld [vmem:[#allocation4 + $0x28] sm:$0xff]
  %v1904 = vld [vmem:[#allocation4 + $0x30] sm:$0xff]
  %v1905 = vld [vmem:[#allocation4 + $0x38] sm:$0xff]
  %v1906 = vld [vmem:[#allocation4 + $0x40] sm:$0xff]
  %v1907 = vld [vmem:[#allocation4 + $0x48] sm:$0xff]
  %v1908 = vld [vmem:[#allocation4 + $0x50] sm:$0xff]
  %v1909 = vld [vmem:[#allocation4 + $0x58] sm:$0xff]
  %v1910 = vld [vmem:[#allocation4 + $0x60] sm:$0xff]
  %v1911 = vld [vmem:[#allocation4 + $0x68] sm:$0xff]
  %v1912 = vld [vmem:[#allocation4 + $0x70] sm:$0xff]
  %v1913 = vld [vmem:[#allocation4 + $0x78] sm:$0xff]
  %v1914 = vld [vmem:[#allocation4 + $0x80] sm:$0xff]
  %v1915 = vld [vmem:[#allocation4 + $0x88] sm:$0xff]
  %v1916 = vld [vmem:[#allocation4 + $0x90] sm:$0xff]
  %v1917 = vld [vmem:[#allocation4 + $0x98] sm:$0xff]
  %v1918 = vld [vmem:[#allocation4 + $0xa0] sm:$0xff]
  %v1919 = vld [vmem:[#allocation4 + $0xa8] sm:$0xff]
  %v1920 = vld [vmem:[#allocation4 + $0xb0] sm:$0xff]
  %v1921 = vld [vmem:[#allocation4 + $0xb8] sm:$0xff]
  %v1922 = vld [vmem:[#allocation4 + $0xc0] sm:$0xff]
  %v1923 = vld [vmem:[#allocation4 + $0xc8] sm:$0xff]
  %v1924 = vld [vmem:[#allocation4 + $0xd0] sm:$0xff]
  %v1925 = vld [vmem:[#allocation4 + $0xd8] sm:$0xff]
  %v1926 = vld [vmem:[#allocation4 + $0xe0] sm:$0xff]
  %v1927 = vld [vmem:[#allocation4 + $0xe8] sm:$0xff]
  %v1928 = vld [vmem:[#allocation4 + $0xf0] sm:$0xff]
  %v1929 = vld [vmem:[#allocation4 + $0xf8] sm:$0xff]
  %v1930 = vld [vmem:[#allocation4 + $0x100] sm:$0xff]
  %v1931 = vld [vmem:[#allocation4 + $0x108] sm:$0xff]
  %v1932 = vld [vmem:[#allocation4 + $0x110] sm:$0xff]
  %v1933 = vld [vmem:[#allocation4 + $0x118] sm:$0xff]
  %v1934 = vld [vmem:[#allocation4 + $0x120] sm:$0xff]
  %v1935 = vld [vmem:[#allocation4 + $0x128] sm:$0xff]
  %v1936 = vld [vmem:[#allocation4 + $0x130] sm:$0xff]
  %v1937 = vld [vmem:[#allocation4 + $0x138] sm:$0xff]
  %v1938 = vld [vmem:[#allocation4 + $0x140] sm:$0xff]
  %v1939 = vld [vmem:[#allocation4 + $0x148] sm:$0xff]
  %v1940 = vld [vmem:[#allocation4 + $0x150] sm:$0xff]
  %v1941 = vld [vmem:[#allocation4 + $0x158] sm:$0xff]
  %v1942 = vld [vmem:[#allocation4 + $0x160] sm:$0xff]
  %v1943 = vld [vmem:[#allocation4 + $0x168] sm:$0xff]
  %v1944 = vld [vmem:[#allocation4 + $0x170] sm:$0xff]
  %v1945 = vld [vmem:[#allocation4 + $0x178] sm:$0xff]
  %v1946 = vld [vmem:[#allocation4 + $0x180] sm:$0xff]
  %v1947 = vld [vmem:[#allocation4 + $0x188] sm:$0xff]
  %v1948 = vld [vmem:[#allocation4 + $0x190] sm:$0xff]
  %v1949 = vld [vmem:[#allocation4 + $0x198] sm:$0xff]
  %v1950 = vld [vmem:[#allocation4 + $0x1a0] sm:$0xff]
  %v1951 = vld [vmem:[#allocation4 + $0x1a8] sm:$0xff]
  %v1952 = vld [vmem:[%s3] sm:$0xff]
  %v1953 = vld [vmem:[%s6] sm:$0xff]
  %1955 = vset.pattern.permute.xlu0 0
  %1956 = vperm.xlu0 %1955, %v1953
  %v1957 = vpop.permute.xlu0 %1956
  %v1960 = vsel %vm500, %v1952, 0
  %1962 = vmatprep.subr.mxu0 0.0
  %1963 = vmatpush1.msra.mxu0 0.0
  %1964 = vmatprep.subr.mxu0 0.0
  %1965 = vmatpush1.msra.mxu0 0.0
  %1966 = vmatprep.subr.mxu0 0.0
  %1967 = vmatpush1.msra.mxu0 0.0
  %1968 = vmatprep.subr.mxu0 0.0
  %1969 = vmatpush1.msra.mxu0 0.0
  %1970 = vmatprep.subr.mxu0 0.0
  %1971 = vmatpush1.msra.mxu0 0.0
  %1972 = vmatprep.subr.mxu0 0.0
  %1973 = vmatpush1.msra.mxu0 0.0
  %1974 = vmatprep.subr.mxu0 0.0
  %1975 = vmatpush1.msra.mxu0 0.0
  %1976 = vmatprep.subr.mxu0 %v1947
  %1977 = vmatpush1.msra.mxu0 %v1946
  %1978 = vmatprep.subr.mxu0 %v1941
  %1979 = vmatpush1.msra.mxu0 %v1940
  %1980 = vmatprep.subr.mxu0 %v1935
  %1981 = vmatpush1.msra.mxu0 %v1934
  %1982 = vmatprep.subr.mxu0 %v1929
  %1983 = vmatpush1.msra.mxu0 %v1928
  %1984 = vmatprep.subr.mxu0 %v1923
  %1985 = vmatpush1.msra.mxu0 %v1922
  %1986 = vmatprep.subr.mxu0 %v1917
  %1987 = vmatpush1.msra.mxu0 %v1916
  %1988 = vmatprep.subr.mxu0 %v1911
  %1989 = vmatpush1.msra.mxu0 %v1910
  %1990 = vmatprep.subr.mxu0 %v1905
  %1991 = vmatpush1.msra.mxu0 %v1904
  %1992 = vmatprep.subr.mxu0 %v1899
  %1993 = vmatpush1.msra.mxu0 %v1898
  %1994 = vmatprep.subr.mxu0 0.0
  %1995 = vmatpush2.msra.mxu0 0.0
  %1996 = vmatprep.subr.mxu0 0.0
  %1997 = vmatpush2.msra.mxu0 0.0
  %1998 = vmatprep.subr.mxu0 0.0
  %1999 = vmatpush2.msra.mxu0 0.0
  %2000 = vmatprep.subr.mxu0 0.0
  %2001 = vmatpush2.msra.mxu0 0.0
  %2002 = vmatprep.subr.mxu0 0.0
  %2003 = vmatpush2.msra.mxu0 0.0
  %2004 = vmatprep.subr.mxu0 0.0
  %2005 = vmatpush2.msra.mxu0 0.0
  %2006 = vmatprep.subr.mxu0 0.0
  %2007 = vmatpush2.msra.mxu0 0.0
  %2008 = vmatprep.subr.mxu0 0.0
  %2009 = vmatpush2.msra.mxu0 0.0
  %2010 = vmatprep.subr.mxu0 0.0
  %2011 = vmatpush2.msra.mxu0 0.0
  %2012 = vmatprep.subr.mxu0 0.0
  %2013 = vmatpush2.msra.mxu0 0.0
  %2014 = vmatprep.subr.mxu0 0.0
  %2015 = vmatpush2.msra.mxu0 0.0
  %2016 = vmatprep.subr.mxu0 0.0
  %2017 = vmatpush2.msra.mxu0 0.0
  %2018 = vmatprep.subr.mxu0 0.0
  %2019 = vmatpush2.msra.mxu0 0.0
  %2020 = vmatprep.subr.mxu0 0.0
  %2021 = vmatpush2.msra.mxu0 0.0
  %2022 = vmatprep.subr.mxu0 0.0
  %2023 = vmatpush2.msra.mxu0 0.0
  %2024 = vmatprep.subr.mxu0 0.0
  %2025 = vmatpush2.msra.mxu0 0.0
  %2026 = vmatprep.mubr.f32.mxu0 0.0
  %2027 = vmatmul.mubr.f32.gmra.mxu0 %v1960
  %v2028 = vpop.f32.mrf.mxu0
  %v2029 = vadd.f32 %v1957, %v2028
  %v2030 = vpop.f32.mrf.mxu0
  %v2031 = vadd.f32 %v1957, %v2030
  %2032 = vdwg.mxu0
  %2033 = vmatprep.subr.mxu0 0.0
  %2034 = vmatpush1.msra.mxu0 0.0
  %2035 = vmatprep.subr.mxu0 0.0
  %2036 = vmatpush1.msra.mxu0 0.0
  %2037 = vmatprep.subr.mxu0 0.0
  %2038 = vmatpush1.msra.mxu0 0.0
  %2039 = vmatprep.subr.mxu0 0.0
  %2040 = vmatpush1.msra.mxu0 0.0
  %2041 = vmatprep.subr.mxu0 0.0
  %2042 = vmatpush1.msra.mxu0 0.0
  %2043 = vmatprep.subr.mxu0 0.0
  %2044 = vmatpush1.msra.mxu0 0.0
  %2045 = vmatprep.subr.mxu0 0.0
  %2046 = vmatpush1.msra.mxu0 0.0
  %2047 = vmatprep.subr.mxu0 %v1949
  %2048 = vmatpush1.msra.mxu0 %v1948
  %2049 = vmatprep.subr.mxu0 %v1943
  %2050 = vmatpush1.msra.mxu0 %v1942
  %2051 = vmatprep.subr.mxu0 %v1937
  %2052 = vmatpush1.msra.mxu0 %v1936
  %2053 = vmatprep.subr.mxu0 %v1931
  %2054 = vmatpush1.msra.mxu0 %v1930
  %2055 = vmatprep.subr.mxu0 %v1925
  %2056 = vmatpush1.msra.mxu0 %v1924
  %2057 = vmatprep.subr.mxu0 %v1919
  %2058 = vmatpush1.msra.mxu0 %v1918
  %2059 = vmatprep.subr.mxu0 %v1913
  %2060 = vmatpush1.msra.mxu0 %v1912
  %2061 = vmatprep.subr.mxu0 %v1907
  %2062 = vmatpush1.msra.mxu0 %v1906
  %2063 = vmatprep.subr.mxu0 %v1901
  %2064 = vmatpush1.msra.mxu0 %v1900
  %2065 = vmatprep.subr.mxu0 0.0
  %2066 = vmatpush2.msra.mxu0 0.0
  %2067 = vmatprep.subr.mxu0 0.0
  %2068 = vmatpush2.msra.mxu0 0.0
  %2069 = vmatprep.subr.mxu0 0.0
  %2070 = vmatpush2.msra.mxu0 0.0
  %2071 = vmatprep.subr.mxu0 0.0
  %2072 = vmatpush2.msra.mxu0 0.0
  %2073 = vmatprep.subr.mxu0 0.0
  %2074 = vmatpush2.msra.mxu0 0.0
  %2075 = vmatprep.subr.mxu0 0.0
  %2076 = vmatpush2.msra.mxu0 0.0
  %2077 = vmatprep.subr.mxu0 0.0
  %2078 = vmatpush2.msra.mxu0 0.0
  %2079 = vmatprep.subr.mxu0 0.0
  %2080 = vmatpush2.msra.mxu0 0.0
  %2081 = vmatprep.subr.mxu0 0.0
  %2082 = vmatpush2.msra.mxu0 0.0
  %2083 = vmatprep.subr.mxu0 0.0
  %2084 = vmatpush2.msra.mxu0 0.0
  %2085 = vmatprep.subr.mxu0 0.0
  %2086 = vmatpush2.msra.mxu0 0.0
  %2087 = vmatprep.subr.mxu0 0.0
  %2088 = vmatpush2.msra.mxu0 0.0
  %2089 = vmatprep.subr.mxu0 0.0
  %2090 = vmatpush2.msra.mxu0 0.0
  %2091 = vmatprep.subr.mxu0 0.0
  %2092 = vmatpush2.msra.mxu0 0.0
  %2093 = vmatprep.subr.mxu0 0.0
  %2094 = vmatpush2.msra.mxu0 0.0
  %2095 = vmatprep.subr.mxu0 0.0
  %2096 = vmatpush2.msra.mxu0 0.0
  %2097 = vmatprep.mubr.f32.mxu0 0.0
  %2098 = vmatmul.mubr.f32.gmra.mxu0 %v1960
  %v2099 = vpop.f32.mrf.mxu0
  %v2100 = vadd.f32 %v1957, %v2099
  %v2101 = vpop.f32.mrf.mxu0
  %v2102 = vadd.f32 %v1957, %v2101
  %2103 = vdwg.mxu0
  %2104 = vmatprep.subr.mxu0 0.0
  %2105 = vmatpush1.msra.mxu0 0.0
  %2106 = vmatprep.subr.mxu0 0.0
  %2107 = vmatpush1.msra.mxu0 0.0
  %2108 = vmatprep.subr.mxu0 0.0
  %2109 = vmatpush1.msra.mxu0 0.0
  %2110 = vmatprep.subr.mxu0 0.0
  %2111 = vmatpush1.msra.mxu0 0.0
  %2112 = vmatprep.subr.mxu0 0.0
  %2113 = vmatpush1.msra.mxu0 0.0
  %2114 = vmatprep.subr.mxu0 0.0
  %2115 = vmatpush1.msra.mxu0 0.0
  %2116 = vmatprep.subr.mxu0 0.0
  %2117 = vmatpush1.msra.mxu0 0.0
  %2118 = vmatprep.subr.mxu0 %v1951
  %2119 = vmatpush1.msra.mxu0 %v1950
  %2120 = vmatprep.subr.mxu0 %v1945
  %2121 = vmatpush1.msra.mxu0 %v1944
  %2122 = vmatprep.subr.mxu0 %v1939
  %2123 = vmatpush1.msra.mxu0 %v1938
  %2124 = vmatprep.subr.mxu0 %v1933
  %2125 = vmatpush1.msra.mxu0 %v1932
  %2126 = vmatprep.subr.mxu0 %v1927
  %2127 = vmatpush1.msra.mxu0 %v1926
  %2128 = vmatprep.subr.mxu0 %v1921
  %2129 = vmatpush1.msra.mxu0 %v1920
  %2130 = vmatprep.subr.mxu0 %v1915
  %2131 = vmatpush1.msra.mxu0 %v1914
  %2132 = vmatprep.subr.mxu0 %v1909
  %2133 = vmatpush1.msra.mxu0 %v1908
  %2134 = vmatprep.subr.mxu0 %v1903
  %2135 = vmatpush1.msra.mxu0 %v1902
  %2136 = vmatprep.subr.mxu0 0.0
  %2137 = vmatpush2.msra.mxu0 0.0
  %2138 = vmatprep.subr.mxu0 0.0
  %2139 = vmatpush2.msra.mxu0 0.0
  %2140 = vmatprep.subr.mxu0 0.0
  %2141 = vmatpush2.msra.mxu0 0.0
  %2142 = vmatprep.subr.mxu0 0.0
  %2143 = vmatpush2.msra.mxu0 0.0
  %2144 = vmatprep.subr.mxu0 0.0
  %2145 = vmatpush2.msra.mxu0 0.0
  %2146 = vmatprep.subr.mxu0 0.0
  %2147 = vmatpush2.msra.mxu0 0.0
  %2148 = vmatprep.subr.mxu0 0.0
  %2149 = vmatpush2.msra.mxu0 0.0
  %2150 = vmatprep.subr.mxu0 0.0
  %2151 = vmatpush2.msra.mxu0 0.0
  %2152 = vmatprep.subr.mxu0 0.0
  %2153 = vmatpush2.msra.mxu0 0.0
  %2154 = vmatprep.subr.mxu0 0.0
  %2155 = vmatpush2.msra.mxu0 0.0
  %2156 = vmatprep.subr.mxu0 0.0
  %2157 = vmatpush2.msra.mxu0 0.0
  %2158 = vmatprep.subr.mxu0 0.0
  %2159 = vmatpush2.msra.mxu0 0.0
  %2160 = vmatprep.subr.mxu0 0.0
  %2161 = vmatpush2.msra.mxu0 0.0
  %2162 = vmatprep.subr.mxu0 0.0
  %2163 = vmatpush2.msra.mxu0 0.0
  %2164 = vmatprep.subr.mxu0 0.0
  %2165 = vmatpush2.msra.mxu0 0.0
  %2166 = vmatprep.subr.mxu0 0.0
  %2167 = vmatpush2.msra.mxu0 0.0
  %2168 = vmatprep.mubr.f32.mxu0 0.0
  %2169 = vmatmul.mubr.f32.gmra.mxu0 %v1960
  %v2170 = vpop.f32.mrf.mxu0
  %v2171 = vadd.f32 %v1957, %v2170
  %v2172 = vpop.f32.mrf.mxu0
  %v2173 = vadd.f32 %v1957, %v2172
  %2174 = vdwg.mxu0
  %vm2175 = vcmp.ge.f32.partialorder %v2029, 0.0
  %vm2176 = vcmp.ge.f32.partialorder %v2031, 0.0
  %vm2177 = vcmp.ge.f32.partialorder %v2100, 0.0
  %vm2178 = vcmp.ge.f32.partialorder %v2102, 0.0
  %vm2179 = vcmp.ge.f32.partialorder %v2171, 0.0
  %vm2180 = vcmp.ge.f32.partialorder %v2173, 0.0
  %v2181 = vmul.f32 %v2029, 0.1
  %v2182 = vmul.f32 %v2031, 0.1
  %v2183 = vmul.f32 %v2100, 0.1
  %v2184 = vmul.f32 %v2102, 0.1
  %v2185 = vmul.f32 %v2171, 0.1
  %v2186 = vmul.f32 %v2173, 0.1
  %v2187 = vsel %vm2175, %v2029, %v2181
  %v2188 = vsel %vm2176, %v2031, %v2182
  %v2189 = vsel %vm2177, %v2100, %v2183
  %v2190 = vsel %vm2178, %v2102, %v2184
  %v2191 = vsel %vm2179, %v2171, %v2185
  %v2192 = vsel %vm2180, %v2173, %v2186
  %2193 = vst [vmem:[%s11] sm:$0xff] %v2187
  %2194 = vst [vmem:[%s11 + $0x8] sm:$0xff] %v2188
  %2195 = vst [vmem:[%s11 + $0x10] sm:$0xff] %v2189
  %2196 = vst [vmem:[%s11 + $0x18] sm:$0xff] %v2190
  %2197 = vst [vmem:[%s11 + $0x20] sm:$0xff] %v2191
  %2198 = vst [vmem:[%s11 + $0x28] sm:$0xff] %v2192
  // Predicated region
  $region38: #{_lambda_.1} parent=0 // pred_check
    _
  $region39: #{_lambda_.1} parent=0 // pred_check_branch
    %2200 = sbr.rel (0) target = $region41
  $region40: #{_lambda_.1} parent=0 // pred_region
    _
  $region41: #{_lambda_.1} parent=0 // pred_fallthru
    _
  // Predicated region
  $region42: #{_lambda_.1} parent=0 // pred_check
    _
  $region43: #{_lambda_.1} parent=0 // pred_check_branch
    %2202 = sbr.rel (0) target = $region45
  $region44: #{_lambda_.1} parent=0 // pred_region
    _
  $region45: #{_lambda_.1} parent=0 // pred_fallthru
    _
  // Predicated region
  $region46: #{_lambda_.1} parent=0 // pred_check
    _
  $region47: #{_lambda_.1} parent=0 // pred_check_branch
    %2204 = sbr.rel (0) target = $region49
  $region48: #{_lambda_.1} parent=0 // pred_region
    _
  $region49: #{_lambda_.1} parent=0 // pred_fallthru
    _
  // Predicated region
  $region50: #{_lambda_.1} parent=0 // pred_check
    _
  $region51: #{_lambda_.1} parent=0 // pred_check_branch
    %2206 = sbr.rel (0) target = $region53
  $region52: #{_lambda_.1} parent=0 // pred_region
    _
  $region53: #{_lambda_.1} parent=0 // pred_fallthru
    _
  // Predicated region
  $region54: #{_lambda_.1} parent=0 // pred_check
    _
  $region55: #{_lambda_.1} parent=0 // pred_check_branch
    %2208 = sbr.rel (0) target = $region57
  $region56: #{_lambda_.1} parent=0 // pred_region
    _
  $region57: #{_lambda_.1} parent=0 // pred_fallthru
    _
  // Predicated region
  $region58: #{_lambda_.1} parent=0 // pred_check
    _
  $region59: #{_lambda_.1} parent=0 // pred_check_branch
    %2210 = sbr.rel (0) target = $region61
  $region60: #{_lambda_.1} parent=0 // pred_region
    _
  $region61: #{_lambda_.1} parent=0 // pred_fallthru
    _

</llo_original>
